<compile_context>
chip_gen: v7x
topology: tpu7x:2x2x1
jax: 0.10.0
libtpu: 0.0.40
codegen_flags: <defaults>
</compile_context>

<pallas_src>
import math

import jax
import jax.numpy as jnp
from jax import lax
from jax.experimental import pallas as pl
from jax.experimental.pallas import tpu as pltpu

# ---------------- small synthetic config ----------------
BATCH = 2
SEQ = 8
HIDDEN = 32
NUM_HEADS = 4
NUM_KV_HEADS = 2
HEAD_DIM = HIDDEN // NUM_HEADS          # 8
N_REP = NUM_HEADS // NUM_KV_HEADS       # 2
NEG_INF = -1e30

D_Q = NUM_HEADS * HEAD_DIM                       # 32
D_KV = NUM_KV_HEADS * HEAD_DIM                   # 16
N_PROJ_HEADS = NUM_HEADS + 2 * NUM_KV_HEADS      # 8  (q heads | k heads | v heads)


# ---------------- Pallas kernel (one batch element per grid step) ----------------
def _attention_kernel(x_ref, w_ref, wo_ref, cos_ref, sin_ref, out_ref):
    """Shapes seen by the kernel (batch dim squeezed by BlockSpec):

      x_ref   : [S, H]                     bf16
      w_ref   : [NH + 2*NKV, H, HD]        bf16  (head-major fused projection)
      wo_ref  : [NH, HD, H]                bf16  (per-head o_proj row blocks)
      cos_ref : [S, HD]                    f32
      sin_ref : [S, HD]                    f32
      out_ref : [S, H]                     bf16
    """
    seq, hidden = x_ref.shape
    x = x_ref[...]                                                    # [S, H] bf16

    # --- fused head-batched projection: one batched MXU matmul gives q, k, v ---
    xb = jnp.broadcast_to(x[None], (N_PROJ_HEADS, seq, hidden))       # tiny; lhs batch
    qkv = jnp.einsum("nsh,nhd->nsd", xb, w_ref[...],
                     preferred_element_type=jnp.float32)              # [8, S, HD] f32

    n_qk = NUM_HEADS + NUM_KV_HEADS
    qk = qkv[:n_qk]                                                   # [NH+NKV, S, HD]
    v = qkv[n_qk:]                                                    # [NKV,    S, HD]

    # --- RoPE on all q and k heads at once; [S, HD] tables broadcast over heads ---
    cos = cos_ref[...][None]                                          # [1, S, HD]
    sin = sin_ref[...][None]
    half = HEAD_DIM // 2
    # rotate_half(x) = concat(-x2, x1) over the last (head_dim) axis.
    # TODO(synk): at realistic HEAD_DIM (>=128) replace with pltpu.roll(qk, half, -1)
    #             and a sign-folded sin table (XLU slot, no lane concat).
    rot = jnp.concatenate([-qk[..., half:], qk[..., :half]], axis=-1)
    qk = qk * cos + rot * sin

    q = qk[:NUM_HEADS]                        # [NH,  S, HD]  (1/sqrt(HD) pre-folded)
    k = qk[NUM_HEADS:]                        # [NKV, S, HD]  (RoPE computed once per kv head)

    # --- GQA: repeat kv heads along the major head axis (repeat_kv ordering) ---
    k_rep = jnp.broadcast_to(k[:, None], (NUM_KV_HEADS, N_REP, seq, HEAD_DIM)
                             ).reshape(NUM_HEADS, seq, HEAD_DIM)
    v_rep = jnp.broadcast_to(v[:, None], (NUM_KV_HEADS, N_REP, seq, HEAD_DIM)
                             ).reshape(NUM_HEADS, seq, HEAD_DIM)

    # --- head-batched scores; causal mask built ONCE per grid step, shared by heads ---
    scores = jnp.einsum("hqd,hkd->hqk",
                        q.astype(jnp.bfloat16), k_rep.astype(jnp.bfloat16),
                        preferred_element_type=jnp.float32)           # [NH, S, S]
    row = lax.broadcasted_iota(jnp.int32, (seq, seq), 0)
    col = lax.broadcasted_iota(jnp.int32, (seq, seq), 1)
    scores = jnp.where((col <= row)[None], scores, NEG_INF)

    # --- single vectorized softmax over the head-stacked slab ---
    m = jnp.max(scores, axis=-1, keepdims=True)                       # [NH, S, 1]
    p = jnp.exp(scores - m)
    denom = jnp.sum(p, axis=-1, keepdims=True)
    ctx = jnp.einsum("hqk,hkd->hqd",
                     p.astype(jnp.bfloat16), v_rep.astype(jnp.bfloat16),
                     preferred_element_type=jnp.float32)              # [NH, S, HD]
    ctx = ctx * pl.reciprocal(denom, approx=True)                     # EUP slot

    # --- o_proj: head-batched matmul against per-head Wo blocks, then reduce over
    #     the head axis (no lane-axis concatenation of head outputs). ---
    partial = jnp.einsum("hqd,hdo->hqo",
                         ctx.astype(jnp.bfloat16), wo_ref[...],
                         preferred_element_type=jnp.float32)          # [NH, S, H]
    out_ref[...] = jnp.sum(partial, axis=0).astype(out_ref.dtype)


# ---------------- wrapper ----------------
def attention_forward(x, params):
    """Pallas implementation of Attention.forward (use_kv_cache=False path)."""
    b, s, h = x.shape
    xb = x.astype(jnp.bfloat16)
    cos = params["cos"][:s]
    sin = params["sin"][:s]

    return pl.pallas_call(
        _attention_kernel,
        out_shape=jax.ShapeDtypeStruct((b, s, h), jnp.bfloat16),
        grid_spec=pltpu.PrefetchScalarGridSpec(
            num_scalar_prefetch=0,
            grid=(b,),                                   # one batch element per step
            in_specs=[
                pl.BlockSpec((None, s, h), lambda i: (i, 0, 0)),               # x
                pl.BlockSpec((N_PROJ_HEADS, h, HEAD_DIM), lambda i: (0, 0, 0)),  # w_heads (resident)
                pl.BlockSpec((NUM_HEADS, HEAD_DIM, h), lambda i: (0, 0, 0)),     # wo_heads (resident)
                pl.BlockSpec((s, HEAD_DIM), lambda i: (0, 0)),                   # cos
                pl.BlockSpec((s, HEAD_DIM), lambda i: (0, 0)),                   # sin
            ],
            out_specs=pl.BlockSpec((None, s, h), lambda i: (i, 0, 0)),
        ),
        compiler_params=pltpu.CompilerParams(
            dimension_semantics=("parallel",)),          # batch axis -> both TCs on v7x
    )(xb, params["w_heads"], params["wo_heads"], cos, sin)


# ---------------- parameter init & RoPE tables ----------------
def init_params(key):
    ks = jax.random.split(key, 4)

    def w(k, shape, scale=0.05):
        return (scale * jax.random.normal(k, shape)).astype(jnp.bfloat16)

    wq = w(ks[0], (HIDDEN, D_Q))           # stored as [in, out]: y = x @ W
    wk = w(ks[1], (HIDDEN, D_KV))
    wv = w(ks[2], (HIDDEN, D_KV))
    wo = w(ks[3], (D_Q, HIDDEN))

    # Head-major fused projection weight [NH + 2*NKV, H, HD].  The 1/sqrt(HD) score
    # scale is folded into the q-head weights once at init (RoPE is linear in q, so
    # scaling q before RoPE == scaling the scores).  No rolled-column duplication.
    q_scale = 1.0 / math.sqrt(HEAD_DIM)
    wq_h = (wq.astype(jnp.float32) * q_scale).astype(jnp.bfloat16)
    wq_h = wq_h.reshape(HIDDEN, NUM_HEADS, HEAD_DIM).transpose(1, 0, 2)
    wk_h = wk.reshape(HIDDEN, NUM_KV_HEADS, HEAD_DIM).transpose(1, 0, 2)
    wv_h = wv.reshape(HIDDEN, NUM_KV_HEADS, HEAD_DIM).transpose(1, 0, 2)
    w_heads = jnp.concatenate([wq_h, wk_h, wv_h], axis=0)      # [8, H, HD] bf16

    # o_proj split into per-head row blocks [NH, HD, H] (row-block reshape only).
    wo_heads = wo.reshape(NUM_HEADS, HEAD_DIM, HIDDEN)

    # RoPE tables (as in RotaryEmbedding.__init__), only [S, HD] f32 — broadcast
    # over heads inside the kernel instead of materializing tiled copies.
    inv_freq = 1.0 / (10000.0 ** (jnp.arange(0, HEAD_DIM, 2, dtype=jnp.float32) / HEAD_DIM))
    t = jnp.arange(SEQ, dtype=jnp.float32)[:, None]
    freqs = t @ inv_freq[None, :]
    freqs = jnp.concatenate([freqs, freqs], axis=-1)            # [S, HD]
    cos = jnp.cos(freqs)
    sin = jnp.sin(freqs)

    return {"wq": wq, "wk": wk, "wv": wv, "wo": wo,
            "cos": cos, "sin": sin,
            "w_heads": w_heads, "wo_heads": wo_heads}


# ---------------- pure-JAX reference (f32) ----------------
def reference_attention(x, p):
    b, s, _ = x.shape
    wq = p["wq"].astype(jnp.float32)
    wk = p["wk"].astype(jnp.float32)
    wv = p["wv"].astype(jnp.float32)
    wo = p["wo"].astype(jnp.float32)

    q = (x @ wq).reshape(b, s, NUM_HEADS, HEAD_DIM)
    k = (x @ wk).reshape(b, s, NUM_KV_HEADS, HEAD_DIM)
    v = (x @ wv).reshape(b, s, NUM_KV_HEADS, HEAD_DIM)

    cos = p["cos"][None, :, None, :]
    sin = p["sin"][None, :, None, :]

    def rot_half(t):
        t1, t2 = jnp.split(t, 2, axis=-1)
        return jnp.concatenate([-t2, t1], axis=-1)

    q = q * cos + rot_half(q) * sin
    k = k * cos + rot_half(k) * sin
    k = jnp.repeat(k, N_REP, axis=2)
    v = jnp.repeat(v, N_REP, axis=2)
    q, k, v = (t.transpose(0, 2, 1, 3) for t in (q, k, v))
    scores = (q @ k.transpose(0, 1, 3, 2)) / math.sqrt(HEAD_DIM)
    mask = jnp.tril(jnp.ones((s, s), bool))
    scores = jnp.where(mask, scores, NEG_INF)
    attn = jax.nn.softmax(scores, axis=-1) @ v
    attn = attn.transpose(0, 2, 1, 3).reshape(b, s, NUM_HEADS * HEAD_DIM)
    return attn @ wo


# ---------------- main ----------------
if __name__ == "__main__":
    key = jax.random.PRNGKey(0)
    kx, kp = jax.random.split(key)
    params = init_params(kp)
    x = jax.random.normal(kx, (BATCH, SEQ, HIDDEN), dtype=jnp.float32)

    out = attention_forward(x, params)
    jax.block_until_ready(out)

    # Reference uses the same bf16-rounded inputs/weights, computed in f32.
    x_rounded = x.astype(jnp.bfloat16).astype(jnp.float32)
    ref = reference_attention(x_rounded, params)

    assert out.shape == (BATCH, SEQ, HIDDEN)
    out_f32 = out.astype(jnp.float32)
    max_err = float(jnp.max(jnp.abs(out_f32 - ref)))
    assert jnp.allclose(out_f32, ref, atol=5e-3, rtol=5e-3), f"max abs err {max_err}"

    print("KERNEL_OK")
</pallas_src>

<mosaic_0001>
module attributes {stable_mosaic.version = 11 : i64} {
  func.func @_attention_kernel(%arg0: i32, %arg1: memref<1x8x32xbf16, #tpu.memory_space<vmem>>, %arg2: memref<8x32x8xbf16, #tpu.memory_space<vmem>>, %arg3: memref<4x8x32xbf16, #tpu.memory_space<vmem>>, %arg4: memref<8x8xf32, #tpu.memory_space<vmem>>, %arg5: memref<8x8xf32, #tpu.memory_space<vmem>>, %arg6: memref<1x8x32xbf16, #tpu.memory_space<vmem>>) attributes {dimension_semantics = [#tpu.dimension_semantics<parallel>], iteration_bounds = array<i64: 2>, scalar_prefetch = 0 : i64, scratch_operands = 0 : i64, tpu.core_type = #tpu.core_type<tc>, window_params = [{transform_indices = @transform_0, window_bounds = array<i64: 1, 8, 32>}, {pipeline_mode = #tpu.pipeline_mode<synchronous>, transform_indices = @transform_1, window_bounds = array<i64: 8, 32, 8>}, {pipeline_mode = #tpu.pipeline_mode<synchronous>, transform_indices = @transform_2, window_bounds = array<i64: 4, 8, 32>}, {pipeline_mode = #tpu.pipeline_mode<synchronous>, transform_indices = @transform_3, window_bounds = array<i64: 8, 8>}, {pipeline_mode = #tpu.pipeline_mode<synchronous>, transform_indices = @transform_4, window_bounds = array<i64: 8, 8>}, {transform_indices = @transform_5, window_bounds = array<i64: 1, 8, 32>}]} {
    %c0 = arith.constant 0 : index
    %c0_0 = arith.constant 0 : index
    %c0_1 = arith.constant 0 : index
    %0 = vector.load %arg1[%c0, %c0_0, %c0_1] : memref<1x8x32xbf16, #tpu.memory_space<vmem>>, vector<1x8x32xbf16>
    %1 = vector.shape_cast %0 : vector<1x8x32xbf16> to vector<8x32xbf16>
    %2 = vector.shape_cast %1 : vector<8x32xbf16> to vector<1x8x32xbf16>
    %3 = vector.shape_cast %2 : vector<1x8x32xbf16> to vector<1x8x32xbf16>
    %4 = vector.broadcast %3 : vector<1x8x32xbf16> to vector<8x8x32xbf16>
    %c0_2 = arith.constant 0 : index
    %c0_3 = arith.constant 0 : index
    %c0_4 = arith.constant 0 : index
    %5 = vector.load %arg2[%c0_2, %c0_3, %c0_4] : memref<8x32x8xbf16, #tpu.memory_space<vmem>>, vector<8x32x8xbf16>
    "tpu.trace_start"() <{level = 10 : i32, message = "nsh,nhd->nsd"}> : () -> ()
    %cst = arith.constant dense<0.000000e+00> : vector<8x8x8xf32>
    %6 = tpu.matmul %4, %5, %cst {dimension_numbers = #tpu.dot_dimension_numbers<[2], [1], [1], [2], [0, 0, 0, 1, 1, 2], [0], [0]>} : vector<8x8x32xbf16>, vector<8x32x8xbf16>, vector<8x8x8xf32> -> vector<8x8x8xf32>
    "tpu.trace_stop"() : () -> ()
    %7 = vector.extract_strided_slice %6 {offsets = [0, 0, 0], sizes = [6, 8, 8], strides = [1, 1, 1]} : vector<8x8x8xf32> to vector<6x8x8xf32>
    %8 = vector.extract_strided_slice %6 {offsets = [6, 0, 0], sizes = [2, 8, 8], strides = [1, 1, 1]} : vector<8x8x8xf32> to vector<2x8x8xf32>
    %c0_5 = arith.constant 0 : index
    %c0_6 = arith.constant 0 : index
    %9 = vector.load %arg4[%c0_5, %c0_6] : memref<8x8xf32, #tpu.memory_space<vmem>>, vector<8x8xf32>
    %10 = vector.shape_cast %9 : vector<8x8xf32> to vector<1x8x8xf32>
    %c0_7 = arith.constant 0 : index
    %c0_8 = arith.constant 0 : index
    %11 = vector.load %arg5[%c0_7, %c0_8] : memref<8x8xf32, #tpu.memory_space<vmem>>, vector<8x8xf32>
    %12 = vector.shape_cast %11 : vector<8x8xf32> to vector<1x8x8xf32>
    %13 = vector.extract_strided_slice %7 {offsets = [0, 0, 4], sizes = [6, 8, 4], strides = [1, 1, 1]} : vector<6x8x8xf32> to vector<6x8x4xf32>
    %cst_9 = arith.constant 0.000000e+00 : f32
    %14 = vector.broadcast %cst_9 : f32 to vector<6x8x4xf32>
    %15 = arith.subf %14, %13 : vector<6x8x4xf32>
    %16 = vector.extract_strided_slice %7 {offsets = [0, 0, 0], sizes = [6, 8, 4], strides = [1, 1, 1]} : vector<6x8x8xf32> to vector<6x8x4xf32>
    %17 = tpu.concatenate %15, %16 in 2 : vector<6x8x4xf32>, vector<6x8x4xf32> -> vector<6x8x8xf32>
    %18 = vector.broadcast %10 : vector<1x8x8xf32> to vector<6x8x8xf32>
    %19 = arith.mulf %7, %18 : vector<6x8x8xf32>
    %20 = vector.broadcast %12 : vector<1x8x8xf32> to vector<6x8x8xf32>
    %21 = arith.mulf %17, %20 : vector<6x8x8xf32>
    %22 = arith.addf %19, %21 : vector<6x8x8xf32>
    %23 = vector.extract_strided_slice %22 {offsets = [0, 0, 0], sizes = [4, 8, 8], strides = [1, 1, 1]} : vector<6x8x8xf32> to vector<4x8x8xf32>
    %24 = vector.extract_strided_slice %22 {offsets = [4, 0, 0], sizes = [2, 8, 8], strides = [1, 1, 1]} : vector<6x8x8xf32> to vector<2x8x8xf32>
    %25 = vector.shape_cast %24 : vector<2x8x8xf32> to vector<2x1x8x8xf32>
    %26 = vector.shape_cast %25 : vector<2x1x8x8xf32> to vector<2x1x8x8xf32>
    %27 = vector.broadcast %26 : vector<2x1x8x8xf32> to vector<2x2x8x8xf32>
    %28 = vector.shape_cast %27 : vector<2x2x8x8xf32> to vector<4x8x8xf32>
    %29 = vector.shape_cast %8 : vector<2x8x8xf32> to vector<2x1x8x8xf32>
    %30 = vector.shape_cast %29 : vector<2x1x8x8xf32> to vector<2x1x8x8xf32>
    %31 = vector.broadcast %30 : vector<2x1x8x8xf32> to vector<2x2x8x8xf32>
    %32 = vector.shape_cast %31 : vector<2x2x8x8xf32> to vector<4x8x8xf32>
    %33 = arith.truncf %23 : vector<4x8x8xf32> to vector<4x8x8xbf16>
    %34 = arith.truncf %28 : vector<4x8x8xf32> to vector<4x8x8xbf16>
    "tpu.trace_start"() <{level = 10 : i32, message = "hqd,hkd->hqk"}> : () -> ()
    %cst_10 = arith.constant dense<0.000000e+00> : vector<4x8x8xf32>
    %35 = tpu.matmul %33, %34, %cst_10 {dimension_numbers = #tpu.dot_dimension_numbers<[2], [2], [1], [1], [0, 0, 0, 1, 1, 1], [0], [0]>} : vector<4x8x8xbf16>, vector<4x8x8xbf16>, vector<4x8x8xf32> -> vector<4x8x8xf32>
    "tpu.trace_stop"() : () -> ()
    %36 = tpu.iota {dimensions = array<i32: 0>} : vector<8x8xi32>
    %37 = tpu.iota {dimensions = array<i32: 1>} : vector<8x8xi32>
    %38 = arith.cmpi sle, %37, %36 : vector<8x8xi32>
    %39 = vector.shape_cast %38 : vector<8x8xi1> to vector<1x8x8xi1>
    %cst_11 = arith.constant -1.000000e+30 : f32
    %40 = vector.shape_cast %39 : vector<1x8x8xi1> to vector<1x8x8xi1>
    %41 = vector.broadcast %40 : vector<1x8x8xi1> to vector<4x8x8xi1>
    %42 = vector.broadcast %cst_11 : f32 to vector<4x8x8xf32>
    %43 = arith.select %41, %35, %42 : vector<4x8x8xi1>, vector<4x8x8xf32>
    %cst_12 = arith.constant dense<0xFF800000> : vector<4x8xf32>
    %44 = vector.multi_reduction <maximumf>, %43, %cst_12 [2] : vector<4x8x8xf32> to vector<4x8xf32>
    %45 = vector.shape_cast %44 : vector<4x8xf32> to vector<4x8x1xf32>
    %46 = vector.broadcast %45 : vector<4x8x1xf32> to vector<4x8x8xf32>
    %47 = arith.subf %43, %46 : vector<4x8x8xf32>
    %48 = math.exp %47 : vector<4x8x8xf32>
    %cst_13 = arith.constant dense<0.000000e+00> : vector<4x8xf32>
    %49 = vector.multi_reduction <add>, %48, %cst_13 [2] : vector<4x8x8xf32> to vector<4x8xf32>
    %50 = vector.shape_cast %49 : vector<4x8xf32> to vector<4x8x1xf32>
    %51 = arith.truncf %48 : vector<4x8x8xf32> to vector<4x8x8xbf16>
    %52 = arith.truncf %32 : vector<4x8x8xf32> to vector<4x8x8xbf16>
    "tpu.trace_start"() <{level = 10 : i32, message = "hqk,hkd->hqd"}> : () -> ()
    %cst_14 = arith.constant dense<0.000000e+00> : vector<4x8x8xf32>
    %53 = tpu.matmul %51, %52, %cst_14 {dimension_numbers = #tpu.dot_dimension_numbers<[2], [1], [1], [2], [0, 0, 0, 1, 1, 2], [0], [0]>} : vector<4x8x8xbf16>, vector<4x8x8xbf16>, vector<4x8x8xf32> -> vector<4x8x8xf32>
    "tpu.trace_stop"() : () -> ()
    %54 = tpu.reciprocal %50 {approx = true} : vector<4x8x1xf32> -> vector<4x8x1xf32>
    %55 = vector.broadcast %54 : vector<4x8x1xf32> to vector<4x8x8xf32>
    %56 = arith.mulf %53, %55 : vector<4x8x8xf32>
    %57 = arith.truncf %56 : vector<4x8x8xf32> to vector<4x8x8xbf16>
    %c0_15 = arith.constant 0 : index
    %c0_16 = arith.constant 0 : index
    %c0_17 = arith.constant 0 : index
    %58 = vector.load %arg3[%c0_15, %c0_16, %c0_17] : memref<4x8x32xbf16, #tpu.memory_space<vmem>>, vector<4x8x32xbf16>
    "tpu.trace_start"() <{level = 10 : i32, message = "hqd,hdo->hqo"}> : () -> ()
    %cst_18 = arith.constant dense<0.000000e+00> : vector<4x8x32xf32>
    %59 = tpu.matmul %57, %58, %cst_18 {dimension_numbers = #tpu.dot_dimension_numbers<[2], [1], [1], [2], [0, 0, 0, 1, 1, 2], [0], [0]>} : vector<4x8x8xbf16>, vector<4x8x32xbf16>, vector<4x8x32xf32> -> vector<4x8x32xf32>
    "tpu.trace_stop"() : () -> ()
    %cst_19 = arith.constant dense<0.000000e+00> : vector<8x32xf32>
    %60 = vector.multi_reduction <add>, %59, %cst_19 [0] : vector<4x8x32xf32> to vector<8x32xf32>
    %61 = arith.truncf %60 : vector<8x32xf32> to vector<8x32xbf16>
    %c0_20 = arith.constant 0 : index
    %c0_21 = arith.constant 0 : index
    %c0_22 = arith.constant 0 : index
    %62 = vector.load %arg6[%c0_20, %c0_21, %c0_22] : memref<1x8x32xbf16, #tpu.memory_space<vmem>>, vector<1x8x32xbf16>
    %63 = vector.shape_cast %62 : vector<1x8x32xbf16> to vector<8x32xbf16>
    %64 = vector.shape_cast %61 : vector<8x32xbf16> to vector<1x8x32xbf16>
    tpu.vector_store %arg6[%c0_20, %c0_21, %c0_22], %64 {strides = array<i32>} : memref<1x8x32xbf16, #tpu.memory_space<vmem>>, vector<1x8x32xbf16>,
    return
  }
  func.func @transform_0(%arg0: i32) -> (i32, i32, i32) {
    %c0_i32 = arith.constant 0 : i32
    %c0_i32_0 = arith.constant 0 : i32
    %c0_i32_1 = arith.constant 0 : i32
    return %arg0, %c0_i32, %c0_i32_0 : i32, i32, i32
  }
  func.func @transform_1(%arg0: i32) -> (i32, i32, i32) {
    %c0_i32 = arith.constant 0 : i32
    %c0_i32_0 = arith.constant 0 : i32
    %c0_i32_1 = arith.constant 0 : i32
    %c0_i32_2 = arith.constant 0 : i32
    return %c0_i32, %c0_i32_0, %c0_i32_1 : i32, i32, i32
  }
  func.func @transform_2(%arg0: i32) -> (i32, i32, i32) {
    %c0_i32 = arith.constant 0 : i32
    %c0_i32_0 = arith.constant 0 : i32
    %c0_i32_1 = arith.constant 0 : i32
    %c0_i32_2 = arith.constant 0 : i32
    return %c0_i32, %c0_i32_0, %c0_i32_1 : i32, i32, i32
  }
  func.func @transform_3(%arg0: i32) -> (i32, i32) {
    %c0_i32 = arith.constant 0 : i32
    %c0_i32_0 = arith.constant 0 : i32
    %c0_i32_1 = arith.constant 0 : i32
    return %c0_i32, %c0_i32_0 : i32, i32
  }
  func.func @transform_4(%arg0: i32) -> (i32, i32) {
    %c0_i32 = arith.constant 0 : i32
    %c0_i32_0 = arith.constant 0 : i32
    %c0_i32_1 = arith.constant 0 : i32
    return %c0_i32, %c0_i32_0 : i32, i32
  }
  func.func @transform_5(%arg0: i32) -> (i32, i32, i32) {
    %c0_i32 = arith.constant 0 : i32
    %c0_i32_0 = arith.constant 0 : i32
    %c0_i32_1 = arith.constant 0 : i32
    return %arg0, %c0_i32, %c0_i32_0 : i32, i32, i32
  }
}

</mosaic_0001>

<llo_original>
// kernel: tpu_custom_call.1
$region0: #{tpu_custom_call.1}
  #allocation0 [shape = 'u32[]', space=smem, size = 0x4, offset = 0x4, fixed_abs, tag = 'smem constant byte address 0x4 - core index']
  #allocation1 [shape = 'u32[144,128]{1,0:T(1,128)}', space=vmem, size = 0x12000, scoped, tag = 'internal scratch']
  %s0 = inlined_call_operand.vmem [shape: bf16[2,8,32], index: 0, kind: input, shape index: {}]
  %s1 = inlined_call_operand.vmem [shape: bf16[8,32,8], index: 1, kind: input, shape index: {}]
  %s2 = inlined_call_operand.vmem [shape: bf16[4,8,32], index: 2, kind: input, shape index: {}]
  %s3 = inlined_call_operand.vmem [shape: f32[8,8], index: 3, kind: input, shape index: {}]
  %s4 = inlined_call_operand.vmem [shape: f32[8,8], index: 4, kind: input, shape index: {}]
  %s5 = inlined_call_operand.hbm [shape: bf16[2,8,32], index: 5, kind: output, shape index: {}]
  %s6 = sld [smem:[#allocation0]]
  $region53: #{tpu_custom_call.1} parent=0
    _
  %s8 = ssub.s32 1, %s6
  %s9 = scalar_select 0, %s8, %s6
  $region1: #{tpu_custom_call.1} parent=0
    #allocation2 [shape = 'u8[4096]{0}', space=vmem, size = 0x1000, scoped, tag = 'output window, operand 0']
    #allocation3 [shape = 's32[2]{0}', space=sflag, size = 0x8, scoped, tag = 'scoped memory for tpu_custom_call.1']
    %10 = vsyncpa [#allocation3], 0
    %s11 = scalar_lea.sflag [#allocation3], 1
    %12 = vsyncpa %s11, 0
    loop: start=0, step=1, limit=4
    $region2: #{tpu_custom_call.1} parent=1 // loop_pre_header
      _
    $region3: #{tpu_custom_call.1} parent=1 // loop_header
      %s14 = sphi 0, %s18
      %p15 = scmp.ge.s32.totalorder %s14, 4
      %s24 = sphi 0, %s26
      %s27 = sphi 0, %s24
      %s28 = sphi 0, %s27
      %s44 = sphi 0, %s28
      %s48 = sphi 0, %s48
      %s50 = sphi 0, %s48
      %s51 = sphi 0, %s50
      %s65 = sphi 0, %s51
      %s69 = sphi 0, %s69
      %s71 = sphi 0, %s69
      %s72 = sphi 0, %s71
      %s86 = sphi 0, %s72
      %s90 = sphi 0, %s90
      %s92 = sphi 0, %s90
      %s93 = sphi 0, %s92
      %s107 = sphi 0, %s93
      %s111 = sphi 0, %s111
      %s113 = sphi 0, %s111
      %s114 = sphi 0, %s113
      %s128 = sphi 0, %s114
      %s134 = sphi 0, %s136
      %s137 = sphi 0, %s134
      %s138 = sphi 0, %s137
      %s154 = sphi 0, %s138
    $region4: #{tpu_custom_call.1} parent=1 // loop_header_branch
      %17 = sbr.rel (%p15) target = $region8
    $region5: #{tpu_custom_call.1} parent=1 // loop_body
      %s19 = ssub.s32 %s14, 1
      %s20 = ssub.s32 %s14, 2
      %s21 = sadd.s32 %s14, 1
      %s22 = ssub.s32 %s14, %s21
      %p23 = scmp.eq.s32.totalorder %s22, 0
      %s25 = sadd.s32 %s24, 1
      %s26 = scalar_select %p23, %s24, %s25
      %p29 = pneg %p23
      %p30 = scmp.eq.s32.totalorder %s14, 1
      %p31 = por %p29, %p30
      %p32 = scmp.ne.s32.totalorder %s24, %s27
      %p33 = scmp.eq.s32.totalorder %s14, 0
      %p34 = por %p32, %p33
      %p35 = scmp.ne.s32.totalorder %s24, %s27
      %p36 = scmp.eq.s32.totalorder %s19, 1
      %p37 = por %p35, %p36
      %p38 = scmp.ne.s32.totalorder %s27, %s28
      %p39 = scmp.eq.s32.totalorder %s19, 0
      %p40 = por %p38, %p39
      %p41 = scmp.ne.s32.totalorder %s27, %s28
      %p42 = scmp.eq.s32.totalorder %s20, 1
      %p43 = por %p41, %p42
      %p45 = scmp.ne.s32.totalorder %s28, %s44
      %p46 = scmp.eq.s32.totalorder %s20, 0
      %p47 = por %p45, %p46
      %s49 = sadd.s32 %s48, 1
      %p52 = scmp.eq.s32.totalorder %s14, 1
      %p53 = scmp.ne.s32.totalorder %s48, %s50
      %p54 = scmp.eq.s32.totalorder %s14, 0
      %p55 = por %p53, %p54
      %p56 = scmp.ne.s32.totalorder %s48, %s50
      %p57 = scmp.eq.s32.totalorder %s19, 1
      %p58 = por %p56, %p57
      %p59 = scmp.ne.s32.totalorder %s50, %s51
      %p60 = scmp.eq.s32.totalorder %s19, 0
      %p61 = por %p59, %p60
      %p62 = scmp.ne.s32.totalorder %s50, %s51
      %p63 = scmp.eq.s32.totalorder %s20, 1
      %p64 = por %p62, %p63
      %p66 = scmp.ne.s32.totalorder %s51, %s65
      %p67 = scmp.eq.s32.totalorder %s20, 0
      %p68 = por %p66, %p67
      %s70 = sadd.s32 %s69, 1
      %p73 = scmp.eq.s32.totalorder %s14, 1
      %p74 = scmp.ne.s32.totalorder %s69, %s71
      %p75 = scmp.eq.s32.totalorder %s14, 0
      %p76 = por %p74, %p75
      %p77 = scmp.ne.s32.totalorder %s69, %s71
      %p78 = scmp.eq.s32.totalorder %s19, 1
      %p79 = por %p77, %p78
      %p80 = scmp.ne.s32.totalorder %s71, %s72
      %p81 = scmp.eq.s32.totalorder %s19, 0
      %p82 = por %p80, %p81
      %p83 = scmp.ne.s32.totalorder %s71, %s72
      %p84 = scmp.eq.s32.totalorder %s20, 1
      %p85 = por %p83, %p84
      %p87 = scmp.ne.s32.totalorder %s72, %s86
      %p88 = scmp.eq.s32.totalorder %s20, 0
      %p89 = por %p87, %p88
      %s91 = sadd.s32 %s90, 1
      %p94 = scmp.eq.s32.totalorder %s14, 1
      %p95 = scmp.ne.s32.totalorder %s90, %s92
      %p96 = scmp.eq.s32.totalorder %s14, 0
      %p97 = por %p95, %p96
      %p98 = scmp.ne.s32.totalorder %s90, %s92
      %p99 = scmp.eq.s32.totalorder %s19, 1
      %p100 = por %p98, %p99
      %p101 = scmp.ne.s32.totalorder %s92, %s93
      %p102 = scmp.eq.s32.totalorder %s19, 0
      %p103 = por %p101, %p102
      %p104 = scmp.ne.s32.totalorder %s92, %s93
      %p105 = scmp.eq.s32.totalorder %s20, 1
      %p106 = por %p104, %p105
      %p108 = scmp.ne.s32.totalorder %s93, %s107
      %p109 = scmp.eq.s32.totalorder %s20, 0
      %p110 = por %p108, %p109
      %s112 = sadd.s32 %s111, 1
      %p115 = scmp.eq.s32.totalorder %s14, 1
      %p116 = scmp.ne.s32.totalorder %s111, %s113
      %p117 = scmp.eq.s32.totalorder %s14, 0
      %p118 = por %p116, %p117
      %p119 = scmp.ne.s32.totalorder %s111, %s113
      %p120 = scmp.eq.s32.totalorder %s19, 1
      %p121 = por %p119, %p120
      %p122 = scmp.ne.s32.totalorder %s113, %s114
      %p123 = scmp.eq.s32.totalorder %s19, 0
      %p124 = por %p122, %p123
      %p125 = scmp.ne.s32.totalorder %s113, %s114
      %p126 = scmp.eq.s32.totalorder %s20, 1
      %p127 = por %p125, %p126
      %p129 = scmp.ne.s32.totalorder %s114, %s128
      %p130 = scmp.eq.s32.totalorder %s20, 0
      %p131 = por %p129, %p130
      %s132 = ssub.s32 %s14, %s21
      %p133 = scmp.eq.s32.totalorder %s132, 0
      %s135 = sadd.s32 %s134, 1
      %s136 = scalar_select %p133, %s134, %s135
      %p139 = pneg %p133
      %p140 = scmp.eq.s32.totalorder %s14, 1
      %p141 = por %p139, %p140
      %p142 = scmp.ne.s32.totalorder %s134, %s137
      %p143 = scmp.eq.s32.totalorder %s14, 0
      %p144 = por %p142, %p143
      %p145 = scmp.ne.s32.totalorder %s134, %s137
      %p146 = scmp.eq.s32.totalorder %s19, 1
      %p147 = por %p145, %p146
      %p148 = scmp.ne.s32.totalorder %s137, %s138
      %p149 = scmp.eq.s32.totalorder %s19, 0
      %p150 = por %p148, %p149
      %p151 = scmp.ne.s32.totalorder %s137, %s138
      %p152 = scmp.eq.s32.totalorder %s20, 1
      %p153 = por %p151, %p152
      %p155 = scmp.ne.s32.totalorder %s138, %s154
      %p156 = scmp.eq.s32.totalorder %s20, 0
      %p157 = por %p155, %p156
      %p158 = scmp.le.s32.totalorder 1, %s14
      %p159 = scmp.lt.s32.totalorder %s14, 3
      %p160 = pnand %p158, %p159
      %p161 = pneg %p160
      // Predicated region
      $region9: #{tpu_custom_call.1} parent=5 // pred_check
        _
      $region10: #{tpu_custom_call.1} parent=5 // pred_check_branch
        %163 = sbr.rel (%p160) target = $region12
      $region11: #{tpu_custom_call.1} parent=5 // pred_region
        %s164 = ssub.s32 %s14, 1
        // Predicated region
        $region13: #{tpu_custom_call.1} parent=11 // pred_check
          %p165 = pneg %p61
        $region14: #{tpu_custom_call.1} parent=11 // pred_check_branch
          %167 = sbr.rel (%p165) target = $region16
        $region15: #{tpu_custom_call.1} parent=11 // pred_region
          _
        $region16: #{tpu_custom_call.1} parent=11 // pred_fallthru
          _
        // Predicated region
        $region17: #{tpu_custom_call.1} parent=11 // pred_check
          %p168 = pneg %p82
        $region18: #{tpu_custom_call.1} parent=11 // pred_check_branch
          %170 = sbr.rel (%p168) target = $region20
        $region19: #{tpu_custom_call.1} parent=11 // pred_region
          _
        $region20: #{tpu_custom_call.1} parent=11 // pred_fallthru
          _
        // Predicated region
        $region21: #{tpu_custom_call.1} parent=11 // pred_check
          %p171 = pneg %p103
        $region22: #{tpu_custom_call.1} parent=11 // pred_check_branch
          %173 = sbr.rel (%p171) target = $region24
        $region23: #{tpu_custom_call.1} parent=11 // pred_region
          _
        $region24: #{tpu_custom_call.1} parent=11 // pred_fallthru
          _
        // Predicated region
        $region25: #{tpu_custom_call.1} parent=11 // pred_check
          %p174 = pneg %p124
        $region26: #{tpu_custom_call.1} parent=11 // pred_check_branch
          %176 = sbr.rel (%p174) target = $region28
        $region27: #{tpu_custom_call.1} parent=11 // pred_region
          _
        $region28: #{tpu_custom_call.1} parent=11 // pred_fallthru
          _
      $region12: #{tpu_custom_call.1} parent=5 // pred_fallthru
        _
      %p177 = scmp.lt.s32.totalorder %s14, 2
      // Predicated region
      $region29: #{tpu_custom_call.1} parent=5 // pred_check
        %p178 = pneg %p177
      $region30: #{tpu_custom_call.1} parent=5 // pred_check_branch
        %180 = sbr.rel (%p178) target = $region32
      $region31: #{tpu_custom_call.1} parent=5 // pred_region
        // Predicated region
        $region33: #{tpu_custom_call.1} parent=31 // pred_check
          %p181 = pneg %p34
        $region34: #{tpu_custom_call.1} parent=31 // pred_check_branch
          %183 = sbr.rel (%p181) target = $region36
        $region35: #{tpu_custom_call.1} parent=31 // pred_region
          %p184 = scmp.lt.s32.totalorder %s14, 1
          %s185 = scalar_select %p184, %s14, 1
          %s186 = smul.addr %s185, 4
          %s187 = scalar_lea.vmem %s0, %s186
        $region36: #{tpu_custom_call.1} parent=31 // pred_fallthru
          _
      $region32: #{tpu_custom_call.1} parent=5 // pred_fallthru
        _
      %p188 = scmp.le.s32.totalorder 1, %s14
      %p189 = scmp.lt.s32.totalorder %s14, 3
      %p190 = pnand %p188, %p189
      %p191 = pneg %p190
      // Predicated region
      $region37: #{tpu_custom_call.1} parent=5 // pred_check
        _
      $region38: #{tpu_custom_call.1} parent=5 // pred_check_branch
        %193 = sbr.rel (%p190) target = $region40
      $region39: #{tpu_custom_call.1} parent=5 // pred_region
        %s194 = ssub.s32 %s14, 1
        %p195 = scmp.lt.s32.totalorder %s19, 1
        %s196 = scalar_select %p195, %s19, 1
        %s197 = smul.addr %s196, 4
        %s198 = scalar_lea.vmem %s0, %s197
        %p199 = pneg %p40
        %p200 = pneg %p37
        %p201 = pneg %p61
        %p202 = pneg %p58
        %p203 = pneg %p82
        %p204 = pneg %p79
        %p205 = pneg %p103
        %p206 = pneg %p100
        %p207 = pneg %p124
        %p208 = pneg %p121
        %p209 = pneg %p150
        %p210 = pneg %p147
        %s211 = sand.u32 %s137, 1
        %s212 = scalar_lea.sflag [#allocation3], %s211
        %s213 = sand.u32 %s137, 1
        %s214 = smul.addr %s213, 4
        %s215 = scalar_lea.vmem [#allocation2], %s214
        %p216 = scmp.lt.s32.totalorder %s19, 1
        %s217 = scalar_select %p216, %s19, 1
        %s218 = smul.addr %s217, 4
        %s219 = scalar_lea.vmem %s0, %s218
        %v221 = vld [vmem:[%s219] sm:$0xf]
        %v222 = vld [vmem:[%s1] sm:$0xf]
        %v223 = vld [vmem:[%s1 + $0x4] sm:$0xf]
        %v224 = vld [vmem:[%s1 + $0x8] sm:$0xf]
        %v225 = vld [vmem:[%s1 + $0xc] sm:$0xf]
        %v226 = vld [vmem:[%s1 + $0x10] sm:$0xf]
        %v227 = vld [vmem:[%s1 + $0x14] sm:$0xf]
        %v228 = vld [vmem:[%s1 + $0x18] sm:$0xf]
        %v229 = vld [vmem:[%s1 + $0x1c] sm:$0xf]
        %v230 = vld [vmem:[%s1 + $0x20] sm:$0xf]
        %v231 = vld [vmem:[%s1 + $0x24] sm:$0xf]
        %v232 = vld [vmem:[%s1 + $0x28] sm:$0xf]
        %v233 = vld [vmem:[%s1 + $0x2c] sm:$0xf]
        %v234 = vld [vmem:[%s1 + $0x30] sm:$0xf]
        %v235 = vld [vmem:[%s1 + $0x34] sm:$0xf]
        %v236 = vld [vmem:[%s1 + $0x38] sm:$0xf]
        %v237 = vld [vmem:[%s1 + $0x3c] sm:$0xf]
        %v238 = vld [vmem:[%s1 + $0x40] sm:$0xf]
        %v239 = vld [vmem:[%s1 + $0x44] sm:$0xf]
        %v240 = vld [vmem:[%s1 + $0x48] sm:$0xf]
        %v241 = vld [vmem:[%s1 + $0x4c] sm:$0xf]
        %v242 = vld [vmem:[%s1 + $0x50] sm:$0xf]
        %v243 = vld [vmem:[%s1 + $0x54] sm:$0xf]
        %v244 = vld [vmem:[%s1 + $0x58] sm:$0xf]
        %v245 = vld [vmem:[%s1 + $0x5c] sm:$0xf]
        %v246 = vld [vmem:[%s1 + $0x60] sm:$0xf]
        %v247 = vld [vmem:[%s1 + $0x64] sm:$0xf]
        %v248 = vld [vmem:[%s1 + $0x68] sm:$0xf]
        %v249 = vld [vmem:[%s1 + $0x6c] sm:$0xf]
        %v250 = vld [vmem:[%s1 + $0x70] sm:$0xf]
        %v251 = vld [vmem:[%s1 + $0x74] sm:$0xf]
        %v252 = vld [vmem:[%s1 + $0x78] sm:$0xf]
        %v253 = vld [vmem:[%s1 + $0x7c] sm:$0xf]
        %v258 = vunpack.c.l.b16 %v222
        %v259 = vunpack.c.l.b16 %v223
        %v260 = vunpack.c.l.b16 %v224
        %v261 = vunpack.c.l.b16 %v225
        %v262 = vpack.c.b16 %v259, %v258
        %v263 = vpack.c.b16 %v261, %v260
        %vm266 = vcmask 261120
        %v268 = vsel %vm266, %v221, 0
        %270 = vmatprep.subr.bf16.mxu0 0
        %271 = vmatpush1.bf16.msra.mxu0 %v262
        %272 = vmatprep.subr.bf16.mxu0 0
        %273 = vmatpush1.bf16.msra.mxu0 %v263
        %274 = vmatprep.subr.bf16.mxu0 0
        %275 = vmatpush1.bf16.msra.mxu0 0
        %276 = vmatprep.subr.bf16.mxu0 0
        %277 = vmatpush1.bf16.msra.mxu0 0
        %278 = vmatprep.subr.bf16.mxu0 0
        %279 = vmatpush1.bf16.msra.mxu0 0
        %280 = vmatprep.subr.bf16.mxu0 0
        %281 = vmatpush1.bf16.msra.mxu0 0
        %282 = vmatprep.subr.bf16.mxu0 0
        %283 = vmatpush1.bf16.msra.mxu0 0
        %284 = vmatprep.subr.bf16.mxu0 0
        %285 = vmatpush1.bf16.msra.mxu0 0
        %286 = vmatprep.subr.bf16.mxu0 0
        %287 = vmatpush1.bf16.msra.mxu0 0
        %288 = vmatprep.subr.bf16.mxu0 0
        %289 = vmatpush1.bf16.msra.mxu0 0
        %290 = vmatprep.subr.bf16.mxu0 0
        %291 = vmatpush1.bf16.msra.mxu0 0
        %292 = vmatprep.subr.bf16.mxu0 0
        %293 = vmatpush1.bf16.msra.mxu0 0
        %294 = vmatprep.subr.bf16.mxu0 0
        %295 = vmatpush1.bf16.msra.mxu0 0
        %296 = vmatprep.subr.bf16.mxu0 0
        %297 = vmatpush1.bf16.msra.mxu0 0
        %298 = vmatprep.subr.bf16.mxu0 0
        %299 = vmatpush1.bf16.msra.mxu0 0
        %300 = vmatprep.subr.bf16.mxu0 0
        %301 = vmatpush1.bf16.msra.mxu0 0
        %302 = vmatprep.mubr.bf16.mxu0 0
        %303 = vmatmul.mubr.bf16.gmra.mrb[0].mxu0 %v268
        %v304 = vpop.f32.mrb[0].mxu0
        %v305 = vadd.f32 0.0, %v304
        %v306 = vpop.f32.mrb[0].mxu0
        %v307 = vpop.f32.mrb[0].mxu0
        %v308 = vpop.f32.mrb[0].mxu0
        %309 = vdwg.mxu0
        %v314 = vunpack.c.l.b16 %v226
        %v315 = vunpack.c.l.b16 %v227
        %v316 = vunpack.c.l.b16 %v228
        %v317 = vunpack.c.l.b16 %v229
        %v318 = vpack.c.b16 %v315, %v314
        %v319 = vpack.c.b16 %v317, %v316
        %322 = vmatprep.subr.bf16.mxu0 0
        %323 = vmatpush1.bf16.msra.mxu0 %v318
        %324 = vmatprep.subr.bf16.mxu0 0
        %325 = vmatpush1.bf16.msra.mxu0 %v319
        %326 = vmatprep.subr.bf16.mxu0 0
        %327 = vmatpush1.bf16.msra.mxu0 0
        %328 = vmatprep.subr.bf16.mxu0 0
        %329 = vmatpush1.bf16.msra.mxu0 0
        %330 = vmatprep.subr.bf16.mxu0 0
        %331 = vmatpush1.bf16.msra.mxu0 0
        %332 = vmatprep.subr.bf16.mxu0 0
        %333 = vmatpush1.bf16.msra.mxu0 0
        %334 = vmatprep.subr.bf16.mxu0 0
        %335 = vmatpush1.bf16.msra.mxu0 0
        %336 = vmatprep.subr.bf16.mxu0 0
        %337 = vmatpush1.bf16.msra.mxu0 0
        %338 = vmatprep.subr.bf16.mxu0 0
        %339 = vmatpush1.bf16.msra.mxu0 0
        %340 = vmatprep.subr.bf16.mxu0 0
        %341 = vmatpush1.bf16.msra.mxu0 0
        %342 = vmatprep.subr.bf16.mxu0 0
        %343 = vmatpush1.bf16.msra.mxu0 0
        %344 = vmatprep.subr.bf16.mxu0 0
        %345 = vmatpush1.bf16.msra.mxu0 0
        %346 = vmatprep.subr.bf16.mxu0 0
        %347 = vmatpush1.bf16.msra.mxu0 0
        %348 = vmatprep.subr.bf16.mxu0 0
        %349 = vmatpush1.bf16.msra.mxu0 0
        %350 = vmatprep.subr.bf16.mxu0 0
        %351 = vmatpush1.bf16.msra.mxu0 0
        %352 = vmatprep.subr.bf16.mxu0 0
        %353 = vmatpush1.bf16.msra.mxu0 0
        %354 = vmatprep.mubr.bf16.mxu0 0
        %355 = vmatmul.mubr.bf16.gmra.mrb[0].mxu0 %v268
        %v356 = vpop.f32.mrb[0].mxu0
        %v357 = vadd.f32 0.0, %v356
        %v358 = vpop.f32.mrb[0].mxu0
        %v359 = vpop.f32.mrb[0].mxu0
        %v360 = vpop.f32.mrb[0].mxu0
        %361 = vdwg.mxu0
        %v366 = vunpack.c.l.b16 %v230
        %v367 = vunpack.c.l.b16 %v231
        %v368 = vunpack.c.l.b16 %v232
        %v369 = vunpack.c.l.b16 %v233
        %v370 = vpack.c.b16 %v367, %v366
        %v371 = vpack.c.b16 %v369, %v368
        %374 = vmatprep.subr.bf16.mxu0 0
        %375 = vmatpush1.bf16.msra.mxu0 %v370
        %376 = vmatprep.subr.bf16.mxu0 0
        %377 = vmatpush1.bf16.msra.mxu0 %v371
        %378 = vmatprep.subr.bf16.mxu0 0
        %379 = vmatpush1.bf16.msra.mxu0 0
        %380 = vmatprep.subr.bf16.mxu0 0
        %381 = vmatpush1.bf16.msra.mxu0 0
        %382 = vmatprep.subr.bf16.mxu0 0
        %383 = vmatpush1.bf16.msra.mxu0 0
        %384 = vmatprep.subr.bf16.mxu0 0
        %385 = vmatpush1.bf16.msra.mxu0 0
        %386 = vmatprep.subr.bf16.mxu0 0
        %387 = vmatpush1.bf16.msra.mxu0 0
        %388 = vmatprep.subr.bf16.mxu0 0
        %389 = vmatpush1.bf16.msra.mxu0 0
        %390 = vmatprep.subr.bf16.mxu0 0
        %391 = vmatpush1.bf16.msra.mxu0 0
        %392 = vmatprep.subr.bf16.mxu0 0
        %393 = vmatpush1.bf16.msra.mxu0 0
        %394 = vmatprep.subr.bf16.mxu0 0
        %395 = vmatpush1.bf16.msra.mxu0 0
        %396 = vmatprep.subr.bf16.mxu0 0
        %397 = vmatpush1.bf16.msra.mxu0 0
        %398 = vmatprep.subr.bf16.mxu0 0
        %399 = vmatpush1.bf16.msra.mxu0 0
        %400 = vmatprep.subr.bf16.mxu0 0
        %401 = vmatpush1.bf16.msra.mxu0 0
        %402 = vmatprep.subr.bf16.mxu0 0
        %403 = vmatpush1.bf16.msra.mxu0 0
        %404 = vmatprep.subr.bf16.mxu0 0
        %405 = vmatpush1.bf16.msra.mxu0 0
        %406 = vmatprep.mubr.bf16.mxu0 0
        %407 = vmatmul.mubr.bf16.gmra.mrb[0].mxu0 %v268
        %v408 = vpop.f32.mrb[0].mxu0
        %v409 = vadd.f32 0.0, %v408
        %v410 = vpop.f32.mrb[0].mxu0
        %v411 = vpop.f32.mrb[0].mxu0
        %v412 = vpop.f32.mrb[0].mxu0
        %413 = vdwg.mxu0
        %v418 = vunpack.c.l.b16 %v234
        %v419 = vunpack.c.l.b16 %v235
        %v420 = vunpack.c.l.b16 %v236
        %v421 = vunpack.c.l.b16 %v237
        %v422 = vpack.c.b16 %v419, %v418
        %v423 = vpack.c.b16 %v421, %v420
        %426 = vmatprep.subr.bf16.mxu0 0
        %427 = vmatpush1.bf16.msra.mxu0 %v422
        %428 = vmatprep.subr.bf16.mxu0 0
        %429 = vmatpush1.bf16.msra.mxu0 %v423
        %430 = vmatprep.subr.bf16.mxu0 0
        %431 = vmatpush1.bf16.msra.mxu0 0
        %432 = vmatprep.subr.bf16.mxu0 0
        %433 = vmatpush1.bf16.msra.mxu0 0
        %434 = vmatprep.subr.bf16.mxu0 0
        %435 = vmatpush1.bf16.msra.mxu0 0
        %436 = vmatprep.subr.bf16.mxu0 0
        %437 = vmatpush1.bf16.msra.mxu0 0
        %438 = vmatprep.subr.bf16.mxu0 0
        %439 = vmatpush1.bf16.msra.mxu0 0
        %440 = vmatprep.subr.bf16.mxu0 0
        %441 = vmatpush1.bf16.msra.mxu0 0
        %442 = vmatprep.subr.bf16.mxu0 0
        %443 = vmatpush1.bf16.msra.mxu0 0
        %444 = vmatprep.subr.bf16.mxu0 0
        %445 = vmatpush1.bf16.msra.mxu0 0
        %446 = vmatprep.subr.bf16.mxu0 0
        %447 = vmatpush1.bf16.msra.mxu0 0
        %448 = vmatprep.subr.bf16.mxu0 0
        %449 = vmatpush1.bf16.msra.mxu0 0
        %450 = vmatprep.subr.bf16.mxu0 0
        %451 = vmatpush1.bf16.msra.mxu0 0
        %452 = vmatprep.subr.bf16.mxu0 0
        %453 = vmatpush1.bf16.msra.mxu0 0
        %454 = vmatprep.subr.bf16.mxu0 0
        %455 = vmatpush1.bf16.msra.mxu0 0
        %456 = vmatprep.subr.bf16.mxu0 0
        %457 = vmatpush1.bf16.msra.mxu0 0
        %458 = vmatprep.mubr.bf16.mxu0 0
        %459 = vmatmul.mubr.bf16.gmra.mrb[0].mxu0 %v268
        %v460 = vpop.f32.mrb[0].mxu0
        %v461 = vadd.f32 0.0, %v460
        %v462 = vpop.f32.mrb[0].mxu0
        %v463 = vpop.f32.mrb[0].mxu0
        %v464 = vpop.f32.mrb[0].mxu0
        %465 = vdwg.mxu0
        %v470 = vunpack.c.l.b16 %v238
        %v471 = vunpack.c.l.b16 %v239
        %v472 = vunpack.c.l.b16 %v240
        %v473 = vunpack.c.l.b16 %v241
        %v474 = vpack.c.b16 %v471, %v470
        %v475 = vpack.c.b16 %v473, %v472
        %478 = vmatprep.subr.bf16.mxu0 0
        %479 = vmatpush1.bf16.msra.mxu0 %v474
        %480 = vmatprep.subr.bf16.mxu0 0
        %481 = vmatpush1.bf16.msra.mxu0 %v475
        %482 = vmatprep.subr.bf16.mxu0 0
        %483 = vmatpush1.bf16.msra.mxu0 0
        %484 = vmatprep.subr.bf16.mxu0 0
        %485 = vmatpush1.bf16.msra.mxu0 0
        %486 = vmatprep.subr.bf16.mxu0 0
        %487 = vmatpush1.bf16.msra.mxu0 0
        %488 = vmatprep.subr.bf16.mxu0 0
        %489 = vmatpush1.bf16.msra.mxu0 0
        %490 = vmatprep.subr.bf16.mxu0 0
        %491 = vmatpush1.bf16.msra.mxu0 0
        %492 = vmatprep.subr.bf16.mxu0 0
        %493 = vmatpush1.bf16.msra.mxu0 0
        %494 = vmatprep.subr.bf16.mxu0 0
        %495 = vmatpush1.bf16.msra.mxu0 0
        %496 = vmatprep.subr.bf16.mxu0 0
        %497 = vmatpush1.bf16.msra.mxu0 0
        %498 = vmatprep.subr.bf16.mxu0 0
        %499 = vmatpush1.bf16.msra.mxu0 0
        %500 = vmatprep.subr.bf16.mxu0 0
        %501 = vmatpush1.bf16.msra.mxu0 0
        %502 = vmatprep.subr.bf16.mxu0 0
        %503 = vmatpush1.bf16.msra.mxu0 0
        %504 = vmatprep.subr.bf16.mxu0 0
        %505 = vmatpush1.bf16.msra.mxu0 0
        %506 = vmatprep.subr.bf16.mxu0 0
        %507 = vmatpush1.bf16.msra.mxu0 0
        %508 = vmatprep.subr.bf16.mxu0 0
        %509 = vmatpush1.bf16.msra.mxu0 0
        %510 = vmatprep.mubr.bf16.mxu0 0
        %511 = vmatmul.mubr.bf16.gmra.mrb[0].mxu0 %v268
        %v512 = vpop.f32.mrb[0].mxu0
        %v513 = vadd.f32 0.0, %v512
        %v514 = vpop.f32.mrb[0].mxu0
        %v515 = vpop.f32.mrb[0].mxu0
        %v516 = vpop.f32.mrb[0].mxu0
        %517 = vdwg.mxu0
        %v522 = vunpack.c.l.b16 %v242
        %v523 = vunpack.c.l.b16 %v243
        %v524 = vunpack.c.l.b16 %v244
        %v525 = vunpack.c.l.b16 %v245
        %v526 = vpack.c.b16 %v523, %v522
        %v527 = vpack.c.b16 %v525, %v524
        %530 = vmatprep.subr.bf16.mxu0 0
        %531 = vmatpush1.bf16.msra.mxu0 %v526
        %532 = vmatprep.subr.bf16.mxu0 0
        %533 = vmatpush1.bf16.msra.mxu0 %v527
        %534 = vmatprep.subr.bf16.mxu0 0
        %535 = vmatpush1.bf16.msra.mxu0 0
        %536 = vmatprep.subr.bf16.mxu0 0
        %537 = vmatpush1.bf16.msra.mxu0 0
        %538 = vmatprep.subr.bf16.mxu0 0
        %539 = vmatpush1.bf16.msra.mxu0 0
        %540 = vmatprep.subr.bf16.mxu0 0
        %541 = vmatpush1.bf16.msra.mxu0 0
        %542 = vmatprep.subr.bf16.mxu0 0
        %543 = vmatpush1.bf16.msra.mxu0 0
        %544 = vmatprep.subr.bf16.mxu0 0
        %545 = vmatpush1.bf16.msra.mxu0 0
        %546 = vmatprep.subr.bf16.mxu0 0
        %547 = vmatpush1.bf16.msra.mxu0 0
        %548 = vmatprep.subr.bf16.mxu0 0
        %549 = vmatpush1.bf16.msra.mxu0 0
        %550 = vmatprep.subr.bf16.mxu0 0
        %551 = vmatpush1.bf16.msra.mxu0 0
        %552 = vmatprep.subr.bf16.mxu0 0
        %553 = vmatpush1.bf16.msra.mxu0 0
        %554 = vmatprep.subr.bf16.mxu0 0
        %555 = vmatpush1.bf16.msra.mxu0 0
        %556 = vmatprep.subr.bf16.mxu0 0
        %557 = vmatpush1.bf16.msra.mxu0 0
        %558 = vmatprep.subr.bf16.mxu0 0
        %559 = vmatpush1.bf16.msra.mxu0 0
        %560 = vmatprep.subr.bf16.mxu0 0
        %561 = vmatpush1.bf16.msra.mxu0 0
        %562 = vmatprep.mubr.bf16.mxu0 0
        %563 = vmatmul.mubr.bf16.gmra.mrb[0].mxu0 %v268
        %v564 = vpop.f32.mrb[0].mxu0
        %v565 = vadd.f32 0.0, %v564
        %v566 = vpop.f32.mrb[0].mxu0
        %v567 = vpop.f32.mrb[0].mxu0
        %v568 = vpop.f32.mrb[0].mxu0
        %569 = vdwg.mxu0
        %v574 = vunpack.c.l.b16 %v246
        %v575 = vunpack.c.l.b16 %v247
        %v576 = vunpack.c.l.b16 %v248
        %v577 = vunpack.c.l.b16 %v249
        %v578 = vpack.c.b16 %v575, %v574
        %v579 = vpack.c.b16 %v577, %v576
        %582 = vmatprep.subr.bf16.mxu0 0
        %583 = vmatpush1.bf16.msra.mxu0 %v578
        %584 = vmatprep.subr.bf16.mxu0 0
        %585 = vmatpush1.bf16.msra.mxu0 %v579
        %586 = vmatprep.subr.bf16.mxu0 0
        %587 = vmatpush1.bf16.msra.mxu0 0
        %588 = vmatprep.subr.bf16.mxu0 0
        %589 = vmatpush1.bf16.msra.mxu0 0
        %590 = vmatprep.subr.bf16.mxu0 0
        %591 = vmatpush1.bf16.msra.mxu0 0
        %592 = vmatprep.subr.bf16.mxu0 0
        %593 = vmatpush1.bf16.msra.mxu0 0
        %594 = vmatprep.subr.bf16.mxu0 0
        %595 = vmatpush1.bf16.msra.mxu0 0
        %596 = vmatprep.subr.bf16.mxu0 0
        %597 = vmatpush1.bf16.msra.mxu0 0
        %598 = vmatprep.subr.bf16.mxu0 0
        %599 = vmatpush1.bf16.msra.mxu0 0
        %600 = vmatprep.subr.bf16.mxu0 0
        %601 = vmatpush1.bf16.msra.mxu0 0
        %602 = vmatprep.subr.bf16.mxu0 0
        %603 = vmatpush1.bf16.msra.mxu0 0
        %604 = vmatprep.subr.bf16.mxu0 0
        %605 = vmatpush1.bf16.msra.mxu0 0
        %606 = vmatprep.subr.bf16.mxu0 0
        %607 = vmatpush1.bf16.msra.mxu0 0
        %608 = vmatprep.subr.bf16.mxu0 0
        %609 = vmatpush1.bf16.msra.mxu0 0
        %610 = vmatprep.subr.bf16.mxu0 0
        %611 = vmatpush1.bf16.msra.mxu0 0
        %612 = vmatprep.subr.bf16.mxu0 0
        %613 = vmatpush1.bf16.msra.mxu0 0
        %614 = vmatprep.mubr.bf16.mxu0 0
        %615 = vmatmul.mubr.bf16.gmra.mrb[0].mxu0 %v268
        %v616 = vpop.f32.mrb[0].mxu0
        %v617 = vadd.f32 0.0, %v616
        %v618 = vpop.f32.mrb[0].mxu0
        %v619 = vpop.f32.mrb[0].mxu0
        %v620 = vpop.f32.mrb[0].mxu0
        %621 = vdwg.mxu0
        %v626 = vunpack.c.l.b16 %v250
        %v627 = vunpack.c.l.b16 %v251
        %v628 = vunpack.c.l.b16 %v252
        %v629 = vunpack.c.l.b16 %v253
        %v630 = vpack.c.b16 %v627, %v626
        %v631 = vpack.c.b16 %v629, %v628
        %634 = vmatprep.subr.bf16.mxu0 0
        %635 = vmatpush1.bf16.msra.mxu0 %v630
        %636 = vmatprep.subr.bf16.mxu0 0
        %637 = vmatpush1.bf16.msra.mxu0 %v631
        %638 = vmatprep.subr.bf16.mxu0 0
        %639 = vmatpush1.bf16.msra.mxu0 0
        %640 = vmatprep.subr.bf16.mxu0 0
        %641 = vmatpush1.bf16.msra.mxu0 0
        %642 = vmatprep.subr.bf16.mxu0 0
        %643 = vmatpush1.bf16.msra.mxu0 0
        %644 = vmatprep.subr.bf16.mxu0 0
        %645 = vmatpush1.bf16.msra.mxu0 0
        %646 = vmatprep.subr.bf16.mxu0 0
        %647 = vmatpush1.bf16.msra.mxu0 0
        %648 = vmatprep.subr.bf16.mxu0 0
        %649 = vmatpush1.bf16.msra.mxu0 0
        %650 = vmatprep.subr.bf16.mxu0 0
        %651 = vmatpush1.bf16.msra.mxu0 0
        %652 = vmatprep.subr.bf16.mxu0 0
        %653 = vmatpush1.bf16.msra.mxu0 0
        %654 = vmatprep.subr.bf16.mxu0 0
        %655 = vmatpush1.bf16.msra.mxu0 0
        %656 = vmatprep.subr.bf16.mxu0 0
        %657 = vmatpush1.bf16.msra.mxu0 0
        %658 = vmatprep.subr.bf16.mxu0 0
        %659 = vmatpush1.bf16.msra.mxu0 0
        %660 = vmatprep.subr.bf16.mxu0 0
        %661 = vmatpush1.bf16.msra.mxu0 0
        %662 = vmatprep.subr.bf16.mxu0 0
        %663 = vmatpush1.bf16.msra.mxu0 0
        %664 = vmatprep.subr.bf16.mxu0 0
        %665 = vmatpush1.bf16.msra.mxu0 0
        %666 = vmatprep.mubr.bf16.mxu0 0
        %667 = vmatmul.mubr.bf16.gmra.mrb[0].mxu0 %v268
        %v668 = vpop.f32.mrb[0].mxu0
        %v669 = vadd.f32 0.0, %v668
        %v670 = vpop.f32.mrb[0].mxu0
        %v671 = vpop.f32.mrb[0].mxu0
        %v672 = vpop.f32.mrb[0].mxu0
        %673 = vdwg.mxu0
        %v674 = vld [vmem:[%s3] sm:$0xff]
        %v675 = vld [vmem:[%s4] sm:$0xff]
        %v676 = vsub.f32 0.0, %v305
        %v677 = vsub.f32 0.0, %v357
        %v678 = vsub.f32 0.0, %v409
        %v679 = vsub.f32 0.0, %v461
        %v680 = vsub.f32 0.0, %v513
        %v681 = vsub.f32 0.0, %v565
        %688 = vrot.lane.b32.xlu0 %v676, 124
        %v689 = vpop.permute.xlu0 %688
        %690 = vrot.lane.b32.xlu0 %v677, 124
        %v691 = vpop.permute.xlu0 %690
        %692 = vrot.lane.b32.xlu0 %v678, 124
        %v693 = vpop.permute.xlu0 %692
        %694 = vrot.lane.b32.xlu0 %v679, 124
        %v695 = vpop.permute.xlu0 %694
        %696 = vrot.lane.b32.xlu0 %v680, 124
        %v697 = vpop.permute.xlu0 %696
        %698 = vrot.lane.b32.xlu0 %v681, 124
        %v699 = vpop.permute.xlu0 %698
        %712 = vrot.lane.b32.xlu0 %v305, 4
        %v713 = vpop.permute.xlu0 %712
        %714 = vrot.lane.b32.xlu0 %v357, 4
        %v715 = vpop.permute.xlu0 %714
        %716 = vrot.lane.b32.xlu0 %v409, 4
        %v717 = vpop.permute.xlu0 %716
        %718 = vrot.lane.b32.xlu0 %v461, 4
        %v719 = vpop.permute.xlu0 %718
        %720 = vrot.lane.b32.xlu0 %v513, 4
        %v721 = vpop.permute.xlu0 %720
        %722 = vrot.lane.b32.xlu0 %v565, 4
        %v723 = vpop.permute.xlu0 %722
        %vm730 = vcmask 31744
        %v731 = vsel %vm730, %v689, %v713
        %v732 = vsel %vm730, %v691, %v715
        %v733 = vsel %vm730, %v693, %v717
        %v734 = vsel %vm730, %v695, %v719
        %v735 = vsel %vm730, %v697, %v721
        %v736 = vsel %vm730, %v699, %v723
        %v737 = vmul.f32 %v305, %v674
        %v738 = vmul.f32 %v357, %v674
        %v739 = vmul.f32 %v409, %v674
        %v740 = vmul.f32 %v461, %v674
        %v741 = vmul.f32 %v513, %v674
        %v742 = vmul.f32 %v565, %v674
        %v743 = vmul.f32 %v731, %v675
        %v744 = vmul.f32 %v732, %v675
        %v745 = vmul.f32 %v733, %v675
        %v746 = vmul.f32 %v734, %v675
        %v747 = vmul.f32 %v735, %v675
        %v748 = vmul.f32 %v736, %v675
        %v749 = vadd.f32 %v737, %v743
        %v750 = vadd.f32 %v738, %v744
        %v751 = vadd.f32 %v739, %v745
        %v752 = vadd.f32 %v740, %v746
        %v753 = vadd.f32 %v741, %v747
        %v754 = vadd.f32 %v742, %v748
        %v755 = vpack.c.bf16 %v749, %v749
        %v756 = vpack.c.bf16 %v750, %v750
        %v757 = vpack.c.bf16 %v751, %v751
        %v758 = vpack.c.bf16 %v752, %v752
        %v759 = vpack.c.bf16 %v753, %v753
        %v760 = vpack.c.bf16 %v754, %v754
        %vm761 = vcmask 64512
        %v763 = vsel %vm761, %v755, 0
        %v766 = vsel %vm761, %v759, 0
        %768 = vmatprep.subr.bf16.mxu0 0
        %769 = vmatpush1.bf16.xpose.msra.mxu0 %v766
        %770 = vmatprep.subr.bf16.mxu0 0
        %771 = vmatpush1.bf16.xpose.msra.mxu0 0
        %772 = vmatprep.subr.bf16.mxu0 0
        %773 = vmatpush1.bf16.xpose.msra.mxu0 0
        %774 = vmatprep.subr.bf16.mxu0 0
        %775 = vmatpush1.bf16.xpose.msra.mxu0 0
        %776 = vmatprep.subr.bf16.mxu0 0
        %777 = vmatpush1.bf16.xpose.msra.mxu0 0
        %778 = vmatprep.subr.bf16.mxu0 0
        %779 = vmatpush1.bf16.xpose.msra.mxu0 0
        %780 = vmatprep.subr.bf16.mxu0 0
        %781 = vmatpush1.bf16.xpose.msra.mxu0 0
        %782 = vmatprep.subr.bf16.mxu0 0
        %783 = vmatpush1.bf16.xpose.msra.mxu0 0
        %784 = vmatprep.subr.bf16.mxu0 0
        %785 = vmatpush1.bf16.xpose.msra.mxu0 0
        %786 = vmatprep.subr.bf16.mxu0 0
        %787 = vmatpush1.bf16.xpose.msra.mxu0 0
        %788 = vmatprep.subr.bf16.mxu0 0
        %789 = vmatpush1.bf16.xpose.msra.mxu0 0
        %790 = vmatprep.subr.bf16.mxu0 0
        %791 = vmatpush1.bf16.xpose.msra.mxu0 0
        %792 = vmatprep.subr.bf16.mxu0 0
        %793 = vmatpush1.bf16.xpose.msra.mxu0 0
        %794 = vmatprep.subr.bf16.mxu0 0
        %795 = vmatpush1.bf16.xpose.msra.mxu0 0
        %796 = vmatprep.subr.bf16.mxu0 0
        %797 = vmatpush1.bf16.xpose.msra.mxu0 0
        %798 = vmatprep.subr.bf16.mxu0 0
        %799 = vmatpush1.bf16.xpose.msra.mxu0 0
        %800 = vmatprep.mubr.bf16.mxu0 0
        %801 = vmatmul.mubr.bf16.gmra.mrb[0].mxu0 %v763
        %v802 = vpop.f32.mrb[0].mxu0
        %v803 = vadd.f32 0.0, %v802
        %v804 = vpop.f32.mrb[0].mxu0
        %v805 = vpop.f32.mrb[0].mxu0
        %v806 = vpop.f32.mrb[0].mxu0
        %807 = vdwg.mxu0
        %v809 = vsel %vm761, %v756, 0
        %811 = vmatprep.subr.bf16.mxu0 0
        %812 = vmatpush1.bf16.xpose.msra.mxu0 %v766
        %813 = vmatprep.subr.bf16.mxu0 0
        %814 = vmatpush1.bf16.xpose.msra.mxu0 0
        %815 = vmatprep.subr.bf16.mxu0 0
        %816 = vmatpush1.bf16.xpose.msra.mxu0 0
        %817 = vmatprep.subr.bf16.mxu0 0
        %818 = vmatpush1.bf16.xpose.msra.mxu0 0
        %819 = vmatprep.subr.bf16.mxu0 0
        %820 = vmatpush1.bf16.xpose.msra.mxu0 0
        %821 = vmatprep.subr.bf16.mxu0 0
        %822 = vmatpush1.bf16.xpose.msra.mxu0 0
        %823 = vmatprep.subr.bf16.mxu0 0
        %824 = vmatpush1.bf16.xpose.msra.mxu0 0
        %825 = vmatprep.subr.bf16.mxu0 0
        %826 = vmatpush1.bf16.xpose.msra.mxu0 0
        %827 = vmatprep.subr.bf16.mxu0 0
        %828 = vmatpush1.bf16.xpose.msra.mxu0 0
        %829 = vmatprep.subr.bf16.mxu0 0
        %830 = vmatpush1.bf16.xpose.msra.mxu0 0
        %831 = vmatprep.subr.bf16.mxu0 0
        %832 = vmatpush1.bf16.xpose.msra.mxu0 0
        %833 = vmatprep.subr.bf16.mxu0 0
        %834 = vmatpush1.bf16.xpose.msra.mxu0 0
        %835 = vmatprep.subr.bf16.mxu0 0
        %836 = vmatpush1.bf16.xpose.msra.mxu0 0
        %837 = vmatprep.subr.bf16.mxu0 0
        %838 = vmatpush1.bf16.xpose.msra.mxu0 0
        %839 = vmatprep.subr.bf16.mxu0 0
        %840 = vmatpush1.bf16.xpose.msra.mxu0 0
        %841 = vmatprep.subr.bf16.mxu0 0
        %842 = vmatpush1.bf16.xpose.msra.mxu0 0
        %843 = vmatprep.mubr.bf16.mxu0 0
        %844 = vmatmul.mubr.bf16.gmra.mrb[0].mxu0 %v809
        %v845 = vpop.f32.mrb[0].mxu0
        %v846 = vadd.f32 0.0, %v845
        %v847 = vpop.f32.mrb[0].mxu0
        %v848 = vpop.f32.mrb[0].mxu0
        %v849 = vpop.f32.mrb[0].mxu0
        %850 = vdwg.mxu0
        %v852 = vsel %vm761, %v757, 0
        %v855 = vsel %vm761, %v760, 0
        %857 = vmatprep.subr.bf16.mxu0 0
        %858 = vmatpush1.bf16.xpose.msra.mxu0 %v855
        %859 = vmatprep.subr.bf16.mxu0 0
        %860 = vmatpush1.bf16.xpose.msra.mxu0 0
        %861 = vmatprep.subr.bf16.mxu0 0
        %862 = vmatpush1.bf16.xpose.msra.mxu0 0
        %863 = vmatprep.subr.bf16.mxu0 0
        %864 = vmatpush1.bf16.xpose.msra.mxu0 0
        %865 = vmatprep.subr.bf16.mxu0 0
        %866 = vmatpush1.bf16.xpose.msra.mxu0 0
        %867 = vmatprep.subr.bf16.mxu0 0
        %868 = vmatpush1.bf16.xpose.msra.mxu0 0
        %869 = vmatprep.subr.bf16.mxu0 0
        %870 = vmatpush1.bf16.xpose.msra.mxu0 0
        %871 = vmatprep.subr.bf16.mxu0 0
        %872 = vmatpush1.bf16.xpose.msra.mxu0 0
        %873 = vmatprep.subr.bf16.mxu0 0
        %874 = vmatpush1.bf16.xpose.msra.mxu0 0
        %875 = vmatprep.subr.bf16.mxu0 0
        %876 = vmatpush1.bf16.xpose.msra.mxu0 0
        %877 = vmatprep.subr.bf16.mxu0 0
        %878 = vmatpush1.bf16.xpose.msra.mxu0 0
        %879 = vmatprep.subr.bf16.mxu0 0
        %880 = vmatpush1.bf16.xpose.msra.mxu0 0
        %881 = vmatprep.subr.bf16.mxu0 0
        %882 = vmatpush1.bf16.xpose.msra.mxu0 0
        %883 = vmatprep.subr.bf16.mxu0 0
        %884 = vmatpush1.bf16.xpose.msra.mxu0 0
        %885 = vmatprep.subr.bf16.mxu0 0
        %886 = vmatpush1.bf16.xpose.msra.mxu0 0
        %887 = vmatprep.subr.bf16.mxu0 0
        %888 = vmatpush1.bf16.xpose.msra.mxu0 0
        %889 = vmatprep.mubr.bf16.mxu0 0
        %890 = vmatmul.mubr.bf16.gmra.mrb[0].mxu0 %v852
        %v891 = vpop.f32.mrb[0].mxu0
        %v892 = vadd.f32 0.0, %v891
        %v893 = vpop.f32.mrb[0].mxu0
        %v894 = vpop.f32.mrb[0].mxu0
        %v895 = vpop.f32.mrb[0].mxu0
        %896 = vdwg.mxu0
        %v898 = vsel %vm761, %v758, 0
        %900 = vmatprep.subr.bf16.mxu0 0
        %901 = vmatpush1.bf16.xpose.msra.mxu0 %v855
        %902 = vmatprep.subr.bf16.mxu0 0
        %903 = vmatpush1.bf16.xpose.msra.mxu0 0
        %904 = vmatprep.subr.bf16.mxu0 0
        %905 = vmatpush1.bf16.xpose.msra.mxu0 0
        %906 = vmatprep.subr.bf16.mxu0 0
        %907 = vmatpush1.bf16.xpose.msra.mxu0 0
        %908 = vmatprep.subr.bf16.mxu0 0
        %909 = vmatpush1.bf16.xpose.msra.mxu0 0
        %910 = vmatprep.subr.bf16.mxu0 0
        %911 = vmatpush1.bf16.xpose.msra.mxu0 0
        %912 = vmatprep.subr.bf16.mxu0 0
        %913 = vmatpush1.bf16.xpose.msra.mxu0 0
        %914 = vmatprep.subr.bf16.mxu0 0
        %915 = vmatpush1.bf16.xpose.msra.mxu0 0
        %916 = vmatprep.subr.bf16.mxu0 0
        %917 = vmatpush1.bf16.xpose.msra.mxu0 0
        %918 = vmatprep.subr.bf16.mxu0 0
        %919 = vmatpush1.bf16.xpose.msra.mxu0 0
        %920 = vmatprep.subr.bf16.mxu0 0
        %921 = vmatpush1.bf16.xpose.msra.mxu0 0
        %922 = vmatprep.subr.bf16.mxu0 0
        %923 = vmatpush1.bf16.xpose.msra.mxu0 0
        %924 = vmatprep.subr.bf16.mxu0 0
        %925 = vmatpush1.bf16.xpose.msra.mxu0 0
        %926 = vmatprep.subr.bf16.mxu0 0
        %927 = vmatpush1.bf16.xpose.msra.mxu0 0
        %928 = vmatprep.subr.bf16.mxu0 0
        %929 = vmatpush1.bf16.xpose.msra.mxu0 0
        %930 = vmatprep.subr.bf16.mxu0 0
        %931 = vmatpush1.bf16.xpose.msra.mxu0 0
        %932 = vmatprep.mubr.bf16.mxu0 0
        %933 = vmatmul.mubr.bf16.gmra.mrb[0].mxu0 %v898
        %v934 = vpop.f32.mrb[0].mxu0
        %v935 = vadd.f32 0.0, %v934
        %v936 = vpop.f32.mrb[0].mxu0
        %v937 = vpop.f32.mrb[0].mxu0
        %v938 = vpop.f32.mrb[0].mxu0
        %939 = vdwg.mxu0
        %v940 = vlaneseq
        %v941 = vshrl.u32 %v940, 7
        %v942 = vlaneseq
        %v943 = vand.u32 %v942, 127
        %vm944 = vcmp.le.s32.totalorder %v943, %v941
        %v945 = vsel %vm944, 1, 0
        %vm946 = vcmp.eq.s32.totalorder %v945, 1
        %v947 = vsel %vm946, %v803, -1e+30
        %v948 = vsel %vm946, %v846, -1e+30
        %v949 = vsel %vm946, %v892, -1e+30
        %v950 = vsel %vm946, %v935, -1e+30
        %v951 = vsel %vm761, %v947, -inf
        %952 = vmax.xlane.f32.xlu0 %v951
        %v953 = vpop.xlane.xlu0 %952
        %v954 = vsel %vm761, %v948, -inf
        %955 = vmax.xlane.f32.xlu0 %v954
        %v956 = vpop.xlane.xlu0 %955
        %v957 = vsel %vm761, %v949, -inf
        %958 = vmax.xlane.f32.xlu0 %v957
        %v959 = vpop.xlane.xlu0 %958
        %v960 = vsel %vm761, %v950, -inf
        %961 = vmax.xlane.f32.xlu0 %v960
        %v962 = vpop.xlane.xlu0 %961
        %v963 = vsub.f32 %v947, %v953
        %v964 = vsub.f32 %v948, %v956
        %v965 = vsub.f32 %v949, %v959
        %v966 = vsub.f32 %v950, %v962
        %v967 = vmul.f32 %v963, 1.442695
        %v968 = vpow.pop %v967
        %v969 = vmul.f32 %v964, 1.442695
        %v970 = vpow.pop %v969
        %v971 = vmul.f32 %v965, 1.442695
        %v972 = vpow.pop %v971
        %v973 = vmul.f32 %v966, 1.442695
        %v974 = vpow.pop %v973
        %v975 = vsel %vm761, %v968, 0.0
        %976 = vadd.xlane.f32.xlu0 %v975
        %v977 = vpop.xlane.xlu0 %976
        %v978 = vsel %vm761, %v970, 0.0
        %979 = vadd.xlane.f32.xlu0 %v978
        %v980 = vpop.xlane.xlu0 %979
        %v981 = vsel %vm761, %v972, 0.0
        %982 = vadd.xlane.f32.xlu0 %v981
        %v983 = vpop.xlane.xlu0 %982
        %v984 = vsel %vm761, %v974, 0.0
        %985 = vadd.xlane.f32.xlu0 %v984
        %v986 = vpop.xlane.xlu0 %985
        %v987 = vpack.c.bf16 %v968, %v968
        %v988 = vpack.c.bf16 %v970, %v970
        %v989 = vpack.c.bf16 %v972, %v972
        %v990 = vpack.c.bf16 %v974, %v974
        %v991 = vpack.c.bf16 %v617, %v617
        %v992 = vpack.c.bf16 %v669, %v669
        %v994 = vsel %vm761, %v987, 0
        %vm996 = vcmask 1043456
        %v998 = vsel %vm996, %v991, 0
        %1000 = vmatprep.subr.bf16.mxu0 0
        %1001 = vmatpush1.bf16.msra.mxu0 %v998
        %1002 = vmatprep.subr.bf16.mxu0 0
        %1003 = vmatpush1.bf16.msra.mxu0 0
        %1004 = vmatprep.subr.bf16.mxu0 0
        %1005 = vmatpush1.bf16.msra.mxu0 0
        %1006 = vmatprep.subr.bf16.mxu0 0
        %1007 = vmatpush1.bf16.msra.mxu0 0
        %1008 = vmatprep.subr.bf16.mxu0 0
        %1009 = vmatpush1.bf16.msra.mxu0 0
        %1010 = vmatprep.subr.bf16.mxu0 0
        %1011 = vmatpush1.bf16.msra.mxu0 0
        %1012 = vmatprep.subr.bf16.mxu0 0
        %1013 = vmatpush1.bf16.msra.mxu0 0
        %1014 = vmatprep.subr.bf16.mxu0 0
        %1015 = vmatpush1.bf16.msra.mxu0 0
        %1016 = vmatprep.subr.bf16.mxu0 0
        %1017 = vmatpush1.bf16.msra.mxu0 0
        %1018 = vmatprep.subr.bf16.mxu0 0
        %1019 = vmatpush1.bf16.msra.mxu0 0
        %1020 = vmatprep.subr.bf16.mxu0 0
        %1021 = vmatpush1.bf16.msra.mxu0 0
        %1022 = vmatprep.subr.bf16.mxu0 0
        %1023 = vmatpush1.bf16.msra.mxu0 0
        %1024 = vmatprep.subr.bf16.mxu0 0
        %1025 = vmatpush1.bf16.msra.mxu0 0
        %1026 = vmatprep.subr.bf16.mxu0 0
        %1027 = vmatpush1.bf16.msra.mxu0 0
        %1028 = vmatprep.subr.bf16.mxu0 0
        %1029 = vmatpush1.bf16.msra.mxu0 0
        %1030 = vmatprep.subr.bf16.mxu0 0
        %1031 = vmatpush1.bf16.msra.mxu0 0
        %1032 = vmatprep.mubr.bf16.mxu0 0
        %1033 = vmatmul.mubr.bf16.gmra.mrb[0].mxu0 %v994
        %v1034 = vpop.f32.mrb[0].mxu0
        %v1035 = vadd.f32 0.0, %v1034
        %v1036 = vpop.f32.mrb[0].mxu0
        %v1037 = vpop.f32.mrb[0].mxu0
        %v1038 = vpop.f32.mrb[0].mxu0
        %1039 = vdwg.mxu0
        %v1041 = vsel %vm761, %v988, 0
        %1043 = vmatprep.subr.bf16.mxu0 0
        %1044 = vmatpush1.bf16.msra.mxu0 %v998
        %1045 = vmatprep.subr.bf16.mxu0 0
        %1046 = vmatpush1.bf16.msra.mxu0 0
        %1047 = vmatprep.subr.bf16.mxu0 0
        %1048 = vmatpush1.bf16.msra.mxu0 0
        %1049 = vmatprep.subr.bf16.mxu0 0
        %1050 = vmatpush1.bf16.msra.mxu0 0
        %1051 = vmatprep.subr.bf16.mxu0 0
        %1052 = vmatpush1.bf16.msra.mxu0 0
        %1053 = vmatprep.subr.bf16.mxu0 0
        %1054 = vmatpush1.bf16.msra.mxu0 0
        %1055 = vmatprep.subr.bf16.mxu0 0
        %1056 = vmatpush1.bf16.msra.mxu0 0
        %1057 = vmatprep.subr.bf16.mxu0 0
        %1058 = vmatpush1.bf16.msra.mxu0 0
        %1059 = vmatprep.subr.bf16.mxu0 0
        %1060 = vmatpush1.bf16.msra.mxu0 0
        %1061 = vmatprep.subr.bf16.mxu0 0
        %1062 = vmatpush1.bf16.msra.mxu0 0
        %1063 = vmatprep.subr.bf16.mxu0 0
        %1064 = vmatpush1.bf16.msra.mxu0 0
        %1065 = vmatprep.subr.bf16.mxu0 0
        %1066 = vmatpush1.bf16.msra.mxu0 0
        %1067 = vmatprep.subr.bf16.mxu0 0
        %1068 = vmatpush1.bf16.msra.mxu0 0
        %1069 = vmatprep.subr.bf16.mxu0 0
        %1070 = vmatpush1.bf16.msra.mxu0 0
        %1071 = vmatprep.subr.bf16.mxu0 0
        %1072 = vmatpush1.bf16.msra.mxu0 0
        %1073 = vmatprep.subr.bf16.mxu0 0
        %1074 = vmatpush1.bf16.msra.mxu0 0
        %1075 = vmatprep.mubr.bf16.mxu0 0
        %1076 = vmatmul.mubr.bf16.gmra.mrb[0].mxu0 %v1041
        %v1077 = vpop.f32.mrb[0].mxu0
        %v1078 = vadd.f32 0.0, %v1077
        %v1079 = vpop.f32.mrb[0].mxu0
        %v1080 = vpop.f32.mrb[0].mxu0
        %v1081 = vpop.f32.mrb[0].mxu0
        %1082 = vdwg.mxu0
        %v1084 = vsel %vm761, %v989, 0
        %v1087 = vsel %vm996, %v992, 0
        %1089 = vmatprep.subr.bf16.mxu0 0
        %1090 = vmatpush1.bf16.msra.mxu0 %v1087
        %1091 = vmatprep.subr.bf16.mxu0 0
        %1092 = vmatpush1.bf16.msra.mxu0 0
        %1093 = vmatprep.subr.bf16.mxu0 0
        %1094 = vmatpush1.bf16.msra.mxu0 0
        %1095 = vmatprep.subr.bf16.mxu0 0
        %1096 = vmatpush1.bf16.msra.mxu0 0
        %1097 = vmatprep.subr.bf16.mxu0 0
        %1098 = vmatpush1.bf16.msra.mxu0 0
        %1099 = vmatprep.subr.bf16.mxu0 0
        %1100 = vmatpush1.bf16.msra.mxu0 0
        %1101 = vmatprep.subr.bf16.mxu0 0
        %1102 = vmatpush1.bf16.msra.mxu0 0
        %1103 = vmatprep.subr.bf16.mxu0 0
        %1104 = vmatpush1.bf16.msra.mxu0 0
        %1105 = vmatprep.subr.bf16.mxu0 0
        %1106 = vmatpush1.bf16.msra.mxu0 0
        %1107 = vmatprep.subr.bf16.mxu0 0
        %1108 = vmatpush1.bf16.msra.mxu0 0
        %1109 = vmatprep.subr.bf16.mxu0 0
        %1110 = vmatpush1.bf16.msra.mxu0 0
        %1111 = vmatprep.subr.bf16.mxu0 0
        %1112 = vmatpush1.bf16.msra.mxu0 0
        %1113 = vmatprep.subr.bf16.mxu0 0
        %1114 = vmatpush1.bf16.msra.mxu0 0
        %1115 = vmatprep.subr.bf16.mxu0 0
        %1116 = vmatpush1.bf16.msra.mxu0 0
        %1117 = vmatprep.subr.bf16.mxu0 0
        %1118 = vmatpush1.bf16.msra.mxu0 0
        %1119 = vmatprep.subr.bf16.mxu0 0
        %1120 = vmatpush1.bf16.msra.mxu0 0
        %1121 = vmatprep.mubr.bf16.mxu0 0
        %1122 = vmatmul.mubr.bf16.gmra.mrb[0].mxu0 %v1084
        %v1123 = vpop.f32.mrb[0].mxu0
        %v1124 = vadd.f32 0.0, %v1123
        %v1125 = vpop.f32.mrb[0].mxu0
        %v1126 = vpop.f32.mrb[0].mxu0
        %v1127 = vpop.f32.mrb[0].mxu0
        %1128 = vdwg.mxu0
        %v1130 = vsel %vm761, %v990, 0
        %1132 = vmatprep.subr.bf16.mxu0 0
        %1133 = vmatpush1.bf16.msra.mxu0 %v1087
        %1134 = vmatprep.subr.bf16.mxu0 0
        %1135 = vmatpush1.bf16.msra.mxu0 0
        %1136 = vmatprep.subr.bf16.mxu0 0
        %1137 = vmatpush1.bf16.msra.mxu0 0
        %1138 = vmatprep.subr.bf16.mxu0 0
        %1139 = vmatpush1.bf16.msra.mxu0 0
        %1140 = vmatprep.subr.bf16.mxu0 0
        %1141 = vmatpush1.bf16.msra.mxu0 0
        %1142 = vmatprep.subr.bf16.mxu0 0
        %1143 = vmatpush1.bf16.msra.mxu0 0
        %1144 = vmatprep.subr.bf16.mxu0 0
        %1145 = vmatpush1.bf16.msra.mxu0 0
        %1146 = vmatprep.subr.bf16.mxu0 0
        %1147 = vmatpush1.bf16.msra.mxu0 0
        %1148 = vmatprep.subr.bf16.mxu0 0
        %1149 = vmatpush1.bf16.msra.mxu0 0
        %1150 = vmatprep.subr.bf16.mxu0 0
        %1151 = vmatpush1.bf16.msra.mxu0 0
        %1152 = vmatprep.subr.bf16.mxu0 0
        %1153 = vmatpush1.bf16.msra.mxu0 0
        %1154 = vmatprep.subr.bf16.mxu0 0
        %1155 = vmatpush1.bf16.msra.mxu0 0
        %1156 = vmatprep.subr.bf16.mxu0 0
        %1157 = vmatpush1.bf16.msra.mxu0 0
        %1158 = vmatprep.subr.bf16.mxu0 0
        %1159 = vmatpush1.bf16.msra.mxu0 0
        %1160 = vmatprep.subr.bf16.mxu0 0
        %1161 = vmatpush1.bf16.msra.mxu0 0
        %1162 = vmatprep.subr.bf16.mxu0 0
        %1163 = vmatpush1.bf16.msra.mxu0 0
        %1164 = vmatprep.mubr.bf16.mxu0 0
        %1165 = vmatmul.mubr.bf16.gmra.mrb[0].mxu0 %v1130
        %v1166 = vpop.f32.mrb[0].mxu0
        %v1167 = vadd.f32 0.0, %v1166
        %v1168 = vpop.f32.mrb[0].mxu0
        %v1169 = vpop.f32.mrb[0].mxu0
        %v1170 = vpop.f32.mrb[0].mxu0
        %1171 = vdwg.mxu0
        %v1172 = vrcp.pop %v977
        %v1173 = vrcp.pop %v980
        %v1174 = vrcp.pop %v983
        %v1175 = vrcp.pop %v986
        %v1176 = vmul.f32 %v1035, %v1172
        %v1177 = vmul.f32 %v1078, %v1173
        %v1178 = vmul.f32 %v1124, %v1174
        %v1179 = vmul.f32 %v1167, %v1175
        %v1180 = vpack.c.bf16 %v1176, %v1176
        %v1181 = vpack.c.bf16 %v1177, %v1177
        %v1182 = vpack.c.bf16 %v1178, %v1178
        %v1183 = vpack.c.bf16 %v1179, %v1179
        %v1184 = vld [vmem:[%s2] sm:$0xf]
        %v1185 = vld [vmem:[%s2 + $0x4] sm:$0xf]
        %v1186 = vld [vmem:[%s2 + $0x8] sm:$0xf]
        %v1187 = vld [vmem:[%s2 + $0xc] sm:$0xf]
        %v1189 = vsel %vm761, %v1180, 0
        %v1192 = vsel %vm996, %v1184, 0
        %1194 = vmatprep.subr.bf16.mxu0 0
        %1195 = vmatpush1.bf16.msra.mxu0 %v1192
        %1196 = vmatprep.subr.bf16.mxu0 0
        %1197 = vmatpush1.bf16.msra.mxu0 0
        %1198 = vmatprep.subr.bf16.mxu0 0
        %1199 = vmatpush1.bf16.msra.mxu0 0
        %1200 = vmatprep.subr.bf16.mxu0 0
        %1201 = vmatpush1.bf16.msra.mxu0 0
        %1202 = vmatprep.subr.bf16.mxu0 0
        %1203 = vmatpush1.bf16.msra.mxu0 0
        %1204 = vmatprep.subr.bf16.mxu0 0
        %1205 = vmatpush1.bf16.msra.mxu0 0
        %1206 = vmatprep.subr.bf16.mxu0 0
        %1207 = vmatpush1.bf16.msra.mxu0 0
        %1208 = vmatprep.subr.bf16.mxu0 0
        %1209 = vmatpush1.bf16.msra.mxu0 0
        %1210 = vmatprep.subr.bf16.mxu0 0
        %1211 = vmatpush1.bf16.msra.mxu0 0
        %1212 = vmatprep.subr.bf16.mxu0 0
        %1213 = vmatpush1.bf16.msra.mxu0 0
        %1214 = vmatprep.subr.bf16.mxu0 0
        %1215 = vmatpush1.bf16.msra.mxu0 0
        %1216 = vmatprep.subr.bf16.mxu0 0
        %1217 = vmatpush1.bf16.msra.mxu0 0
        %1218 = vmatprep.subr.bf16.mxu0 0
        %1219 = vmatpush1.bf16.msra.mxu0 0
        %1220 = vmatprep.subr.bf16.mxu0 0
        %1221 = vmatpush1.bf16.msra.mxu0 0
        %1222 = vmatprep.subr.bf16.mxu0 0
        %1223 = vmatpush1.bf16.msra.mxu0 0
        %1224 = vmatprep.subr.bf16.mxu0 0
        %1225 = vmatpush1.bf16.msra.mxu0 0
        %1226 = vmatprep.mubr.bf16.mxu0 0
        %1227 = vmatmul.mubr.bf16.gmra.mrb[0].mxu0 %v1189
        %v1228 = vpop.f32.mrb[0].mxu0
        %v1229 = vadd.f32 0.0, %v1228
        %v1230 = vpop.f32.mrb[0].mxu0
        %v1231 = vpop.f32.mrb[0].mxu0
        %v1232 = vpop.f32.mrb[0].mxu0
        %1233 = vdwg.mxu0
        %v1235 = vsel %vm761, %v1181, 0
        %v1238 = vsel %vm996, %v1185, 0
        %1240 = vmatprep.subr.bf16.mxu0 0
        %1241 = vmatpush1.bf16.msra.mxu0 %v1238
        %1242 = vmatprep.subr.bf16.mxu0 0
        %1243 = vmatpush1.bf16.msra.mxu0 0
        %1244 = vmatprep.subr.bf16.mxu0 0
        %1245 = vmatpush1.bf16.msra.mxu0 0
        %1246 = vmatprep.subr.bf16.mxu0 0
        %1247 = vmatpush1.bf16.msra.mxu0 0
        %1248 = vmatprep.subr.bf16.mxu0 0
        %1249 = vmatpush1.bf16.msra.mxu0 0
        %1250 = vmatprep.subr.bf16.mxu0 0
        %1251 = vmatpush1.bf16.msra.mxu0 0
        %1252 = vmatprep.subr.bf16.mxu0 0
        %1253 = vmatpush1.bf16.msra.mxu0 0
        %1254 = vmatprep.subr.bf16.mxu0 0
        %1255 = vmatpush1.bf16.msra.mxu0 0
        %1256 = vmatprep.subr.bf16.mxu0 0
        %1257 = vmatpush1.bf16.msra.mxu0 0
        %1258 = vmatprep.subr.bf16.mxu0 0
        %1259 = vmatpush1.bf16.msra.mxu0 0
        %1260 = vmatprep.subr.bf16.mxu0 0
        %1261 = vmatpush1.bf16.msra.mxu0 0
        %1262 = vmatprep.subr.bf16.mxu0 0
        %1263 = vmatpush1.bf16.msra.mxu0 0
        %1264 = vmatprep.subr.bf16.mxu0 0
        %1265 = vmatpush1.bf16.msra.mxu0 0
        %1266 = vmatprep.subr.bf16.mxu0 0
        %1267 = vmatpush1.bf16.msra.mxu0 0
        %1268 = vmatprep.subr.bf16.mxu0 0
        %1269 = vmatpush1.bf16.msra.mxu0 0
        %1270 = vmatprep.subr.bf16.mxu0 0
        %1271 = vmatpush1.bf16.msra.mxu0 0
        %1272 = vmatprep.mubr.bf16.mxu0 0
        %1273 = vmatmul.mubr.bf16.gmra.mrb[0].mxu0 %v1235
        %v1274 = vpop.f32.mrb[0].mxu0
        %v1275 = vadd.f32 0.0, %v1274
        %v1276 = vpop.f32.mrb[0].mxu0
        %v1277 = vpop.f32.mrb[0].mxu0
        %v1278 = vpop.f32.mrb[0].mxu0
        %1279 = vdwg.mxu0
        %v1281 = vsel %vm761, %v1182, 0
        %v1284 = vsel %vm996, %v1186, 0
        %1286 = vmatprep.subr.bf16.mxu0 0
        %1287 = vmatpush1.bf16.msra.mxu0 %v1284
        %1288 = vmatprep.subr.bf16.mxu0 0
        %1289 = vmatpush1.bf16.msra.mxu0 0
        %1290 = vmatprep.subr.bf16.mxu0 0
        %1291 = vmatpush1.bf16.msra.mxu0 0
        %1292 = vmatprep.subr.bf16.mxu0 0
        %1293 = vmatpush1.bf16.msra.mxu0 0
        %1294 = vmatprep.subr.bf16.mxu0 0
        %1295 = vmatpush1.bf16.msra.mxu0 0
        %1296 = vmatprep.subr.bf16.mxu0 0
        %1297 = vmatpush1.bf16.msra.mxu0 0
        %1298 = vmatprep.subr.bf16.mxu0 0
        %1299 = vmatpush1.bf16.msra.mxu0 0
        %1300 = vmatprep.subr.bf16.mxu0 0
        %1301 = vmatpush1.bf16.msra.mxu0 0
        %1302 = vmatprep.subr.bf16.mxu0 0
        %1303 = vmatpush1.bf16.msra.mxu0 0
        %1304 = vmatprep.subr.bf16.mxu0 0
        %1305 = vmatpush1.bf16.msra.mxu0 0
        %1306 = vmatprep.subr.bf16.mxu0 0
        %1307 = vmatpush1.bf16.msra.mxu0 0
        %1308 = vmatprep.subr.bf16.mxu0 0
        %1309 = vmatpush1.bf16.msra.mxu0 0
        %1310 = vmatprep.subr.bf16.mxu0 0
        %1311 = vmatpush1.bf16.msra.mxu0 0
        %1312 = vmatprep.subr.bf16.mxu0 0
        %1313 = vmatpush1.bf16.msra.mxu0 0
        %1314 = vmatprep.subr.bf16.mxu0 0
        %1315 = vmatpush1.bf16.msra.mxu0 0
        %1316 = vmatprep.subr.bf16.mxu0 0
        %1317 = vmatpush1.bf16.msra.mxu0 0
        %1318 = vmatprep.mubr.bf16.mxu0 0
        %1319 = vmatmul.mubr.bf16.gmra.mrb[0].mxu0 %v1281
        %v1320 = vpop.f32.mrb[0].mxu0
        %v1321 = vadd.f32 0.0, %v1320
        %v1322 = vpop.f32.mrb[0].mxu0
        %v1323 = vpop.f32.mrb[0].mxu0
        %v1324 = vpop.f32.mrb[0].mxu0
        %1325 = vdwg.mxu0
        %v1327 = vsel %vm761, %v1183, 0
        %v1330 = vsel %vm996, %v1187, 0
        %1332 = vmatprep.subr.bf16.mxu0 0
        %1333 = vmatpush1.bf16.msra.mxu0 %v1330
        %1334 = vmatprep.subr.bf16.mxu0 0
        %1335 = vmatpush1.bf16.msra.mxu0 0
        %1336 = vmatprep.subr.bf16.mxu0 0
        %1337 = vmatpush1.bf16.msra.mxu0 0
        %1338 = vmatprep.subr.bf16.mxu0 0
        %1339 = vmatpush1.bf16.msra.mxu0 0
        %1340 = vmatprep.subr.bf16.mxu0 0
        %1341 = vmatpush1.bf16.msra.mxu0 0
        %1342 = vmatprep.subr.bf16.mxu0 0
        %1343 = vmatpush1.bf16.msra.mxu0 0
        %1344 = vmatprep.subr.bf16.mxu0 0
        %1345 = vmatpush1.bf16.msra.mxu0 0
        %1346 = vmatprep.subr.bf16.mxu0 0
        %1347 = vmatpush1.bf16.msra.mxu0 0
        %1348 = vmatprep.subr.bf16.mxu0 0
        %1349 = vmatpush1.bf16.msra.mxu0 0
        %1350 = vmatprep.subr.bf16.mxu0 0
        %1351 = vmatpush1.bf16.msra.mxu0 0
        %1352 = vmatprep.subr.bf16.mxu0 0
        %1353 = vmatpush1.bf16.msra.mxu0 0
        %1354 = vmatprep.subr.bf16.mxu0 0
        %1355 = vmatpush1.bf16.msra.mxu0 0
        %1356 = vmatprep.subr.bf16.mxu0 0
        %1357 = vmatpush1.bf16.msra.mxu0 0
        %1358 = vmatprep.subr.bf16.mxu0 0
        %1359 = vmatpush1.bf16.msra.mxu0 0
        %1360 = vmatprep.subr.bf16.mxu0 0
        %1361 = vmatpush1.bf16.msra.mxu0 0
        %1362 = vmatprep.subr.bf16.mxu0 0
        %1363 = vmatpush1.bf16.msra.mxu0 0
        %1364 = vmatprep.mubr.bf16.mxu0 0
        %1365 = vmatmul.mubr.bf16.gmra.mrb[0].mxu0 %v1327
        %v1366 = vpop.f32.mrb[0].mxu0
        %v1367 = vadd.f32 0.0, %v1366
        %v1368 = vpop.f32.mrb[0].mxu0
        %v1369 = vpop.f32.mrb[0].mxu0
        %v1370 = vpop.f32.mrb[0].mxu0
        %1371 = vdwg.mxu0
        %v1372 = vsel %vm266, %v1229, 0.0
        %v1373 = vsel %vm266, %v1275, 0.0
        %v1374 = vadd.f32 %v1372, %v1373
        %v1375 = vsel %vm266, %v1321, 0.0
        %v1376 = vadd.f32 %v1374, %v1375
        %v1377 = vsel %vm266, %v1367, 0.0
        %v1378 = vadd.f32 %v1376, %v1377
        %v1379 = vpack.c.bf16 %v1378, %v1378
        %vm1380 = vcmask 257024
        %1381 = vst.msk [vmem:[%s215] sm:$0xf] %vm1380, %v1379
        %s1382 = sand.u32 %s137, 1
        %s1383 = scalar_lea.sflag [#allocation3], %s1382
        %s1384 = sand.u32 %s137, 1
        %s1385 = smul.addr %s1384, 4
        %s1386 = scalar_lea.vmem [#allocation2], %s1385
        // Predicated region
        $region41: #{tpu_custom_call.1} parent=39 // pred_check
          %p1387 = pneg %p147
        $region42: #{tpu_custom_call.1} parent=39 // pred_check_branch
          %1389 = sbr.rel (%p1387) target = $region44
        $region43: #{tpu_custom_call.1} parent=39 // pred_region
          %s1391 = ssub.s32 64, 64
          %1392 = vsyncadd %s1383, %s1391
          %s1393 = smul.addr %s19, 64
          %s1394 = scalar_lea.hbm %s5, %s1393
          %s1396 = sshll.u32 %s1386, 4
          %s1397 = int_to_ptr.vmem [resolvable:$true] %s1396
          %1399 = dma.vmem_to_hbm [thread:$0]  %s1397, 64, %s1394, %s1383
        $region44: #{tpu_custom_call.1} parent=39 // pred_fallthru
          _
      $region40: #{tpu_custom_call.1} parent=5 // pred_fallthru
        _
      %p1400 = scmp.le.s32.totalorder 2, %s14
      // Predicated region
      $region45: #{tpu_custom_call.1} parent=5 // pred_check
        %p1401 = pneg %p1400
      $region46: #{tpu_custom_call.1} parent=5 // pred_check_branch
        %1403 = sbr.rel (%p1401) target = $region48
      $region47: #{tpu_custom_call.1} parent=5 // pred_region
        %s1404 = ssub.s32 %s14, 2
        // Predicated region
        $region49: #{tpu_custom_call.1} parent=47 // pred_check
          %p1405 = pneg %p153
        $region50: #{tpu_custom_call.1} parent=47 // pred_check_branch
          %1407 = sbr.rel (%p1405) target = $region52
        $region51: #{tpu_custom_call.1} parent=47 // pred_region
          %s1408 = sand.u32 %s138, 1
          %s1409 = scalar_lea.sflag [#allocation3], %s1408
          %s1410 = sand.u32 %s138, 1
          %s1411 = smul.addr %s1410, 4
          %s1412 = scalar_lea.vmem [#allocation2], %s1411
          %1413 = dma.done %s1409, 64
        $region52: #{tpu_custom_call.1} parent=47 // pred_fallthru
          _
      $region48: #{tpu_custom_call.1} parent=5 // pred_fallthru
        _
    $region6: #{tpu_custom_call.1} parent=1 // loop_footer
      %s18 = sadd.s32 1, %s14
    $region7: #{tpu_custom_call.1} parent=1 // loop_footer_branch
      %13 = sbr.rel target = $region3
    $region8: #{tpu_custom_call.1} parent=1 // loop_exit
      _
    %1414 = vsyncpa [#allocation3], 1
    %s1415 = scalar_lea.sflag [#allocation3], 1
    %1416 = vsyncpa %s1415, 1

</llo_original>
